<compile_context>
chip_gen: v6e
topology: v6e:2x2x1
jax: 0.10.0
libtpu: 0.0.40
codegen_flags: <defaults>
</compile_context>

<pallas_src>
import jax
import jax.numpy as jnp
import numpy as np
from jax import lax
from jax.experimental import pallas as pl
from jax.experimental.pallas import tpu as pltpu

# --- Hyperparameters mirroring the module's globals (small, synthetic) ---
VOCAB_SIZE = 64
EMBEDDING_DIM = 32   # equal to HIDDEN_DIM so per-layer input weights stack cleanly
HIDDEN_DIM = 32
N_LAYERS = 2
OUTPUT_SIZE = 1      # declared in the module but unused: self.fc = Linear(hidden, hidden)
KEEP_PROB = 0.3      # nn.Dropout(keep_prob); identity in inference mode (see TODO below)

BATCH = 2
SEQ_LEN = 8


def sentiment_rnn_kernel(ids_ref,       # (T*B, 1) int32  time-major token ids
                         emb_ref,       # (V, E)          embedding table
                         w_ih0_t_ref,   # (E, 4H)         layer-0 input->gate weights (pre-T)
                         w_hh0_t_ref,   # (H, 4H)         layer-0 hidden->gate weights (pre-T)
                         w1_k_ref,      # (2H, 4H)        layer-1 [w_ih_t; w_hh_t] K-stacked
                         bias0_ref,     # (1, 4H)         b_ih0 + b_hh0
                         bias1_ref,     # (1, 4H)         b_ih1 + b_hh1
                         h0_ref,        # (L, B, H)
                         c0_ref,        # (L, B, H)
                         fc_row_ref,    # (1, H)          row H-1 of fc weight (only column used)
                         fc_b_ref,      # (1, 1)          fc bias element H-1
                         out_ref,       # (B, 1)          sigmoid(fc(lstm_out[:, -1]))[:, H-1:H]
                         state_ref):    # (B, 2*L*H)      packed [h_n0 | h_n1 | c_n0 | c_n1]
    L, B, H = h0_ref.shape
    TB = ids_ref.shape[0]
    T = TB // B
    V, _E = emb_ref.shape
    G = 4 * H

    def lstm_gates(gates, c_prev):
        # PyTorch gate order along lanes: i, f, g, o.
        # One full-width sigmoid pass + one full-width tanh pass + one tanh(c) pass,
        # shared by however many layer-rows are stacked along the sublane axis.
        sg = jax.nn.sigmoid(gates)                        # i, f, o valid
        tg = jnp.tanh(gates)                              # g valid
        c_new = sg[:, H:2 * H] * c_prev + sg[:, 0:H] * tg[:, 2 * H:3 * H]
        h_new = sg[:, 3 * H:4 * H] * jnp.tanh(c_new)
        return h_new, c_new

    # ---- Prologue: in-kernel embedding gather (one-hot MXU matmul, V=64 small) and the
    #      layer-0 input projection hoisted out of the recurrence. Off the serial chain. ----
    ids = ids_ref[...]                                                  # (T*B, 1) int32
    onehot = (ids == lax.broadcasted_iota(jnp.int32, (TB, V), 1)).astype(jnp.float32)
    x_flat = jnp.dot(onehot, emb_ref[...].astype(jnp.float32),
                     preferred_element_type=jnp.float32)                # (T*B, E)
    gx0 = (jnp.dot(x_flat, w_ih0_t_ref[...], preferred_element_type=jnp.float32)
           + bias0_ref[...])                                            # (T*B, 4H)

    w_hh0_t = w_hh0_t_ref[...]                                          # (H, 4H)
    w1_k = w1_k_ref[...]                                                # (2H, 4H)
    bias1 = jnp.broadcast_to(bias1_ref[...], (B, G))                    # hoisted broadcast

    h0s, c0s = h0_ref[0], c0_ref[0]                                     # layer-0 state (B, H)
    h1s, c1s = h0_ref[1], c0_ref[1]                                     # layer-1 state (B, H)
    pending = None                                                      # layer-0 output feeding layer-1

    # ---- Fully-unrolled wavefront: iteration s computes layer-0 step s and layer-1 step s-1.
    #      Both layers' gate pre-activations are stacked along sublanes so the three EUP passes
    #      (sigmoid, tanh(gates), tanh(c)) are shared by both layers in a single (4,128) vreg. ----
    for s in range(T + 1):
        g0 = None
        g1 = None
        if s < T:
            g0 = (gx0[s * B:(s + 1) * B, :]
                  + jnp.dot(h0s, w_hh0_t, preferred_element_type=jnp.float32))    # (B, 4H)
        if s >= 1:
            lhs1 = jnp.concatenate([pending, h1s], axis=-1)                       # (B, 2H)
            g1 = jnp.dot(lhs1, w1_k, preferred_element_type=jnp.float32) + bias1  # (B, 4H)

        if (g0 is not None) and (g1 is not None):
            gates = jnp.concatenate([g0, g1], axis=0)                  # (2B, 4H) = (4, 128)
            c_prev = jnp.concatenate([c0s, c1s], axis=0)               # (2B, H)
            h_new, c_new = lstm_gates(gates, c_prev)
            h0_new, h1s = h_new[:B], h_new[B:]
            c0_new, c1s = c_new[:B], c_new[B:]
        elif g0 is not None:                                           # s == 0: layer 0 only
            h0_new, c0_new = lstm_gates(g0, c0s)
        else:                                                          # s == T: layer 1 only
            h1s, c1s = lstm_gates(g1, c1s)

        if s < T:
            h0s, c0s = h0_new, c0_new
            pending = h0_new

    # ---- Epilogue ----
    # Lane-dense packed state slab: [h_n layer0 | h_n layer1 | c_n layer0 | c_n layer1].
    state_ref[...] = jnp.concatenate([h0s, h1s, c0s, c1s], axis=-1)    # (B, 2*L*H) = (2, 128)

    # TODO(synk): nn.Dropout(keep_prob) is identity in inference mode; training-mode random
    # masking (pltpu.prng_*) is not implemented.
    #
    # PyTorch applies fc+sigmoid to all T timesteps then keeps view(B, -1)[:, -1]; that equals
    # sigmoid(fc(lstm_out[:, T-1, :]))[:, H-1], so only that single fc column is computed here
    # (VPU multiply + lane reduce instead of a full (B,H)x(H,H) MXU matmul).
    logit = jnp.sum(h1s * fc_row_ref[...], axis=-1, keepdims=True) + fc_b_ref[...]
    out_ref[...] = jax.nn.sigmoid(logit)


@jax.jit
def sentiment_rnn_forward(x_tokens, hidden, emb_table, w_ih, w_hh, b_ih, b_hh, fc_w, fc_b):
    """Mirrors SentimentRNN.forward(x, hidden). Returns (out[B], (h_n, c_n))."""
    h0, c0 = hidden
    B, T = x_tokens.shape
    L, _, H = h0.shape

    # Token ids, time-major, fed straight to the kernel (gather fused in-kernel).
    ids_tb = jnp.transpose(x_tokens.astype(jnp.int32), (1, 0)).reshape(T * B, 1)

    # Pre-transpose weights so the kernel computes plain row-major matmuls; pre-sum biases;
    # K-stack layer-1's input/hidden weights so its per-step matmul is a single MXU push.
    w_ih_t = jnp.transpose(w_ih, (0, 2, 1))            # (L, E, 4H)
    w_hh_t = jnp.transpose(w_hh, (0, 2, 1))            # (L, H, 4H)
    bias = b_ih + b_hh                                 # (L, 4H)
    w_ih0_t = w_ih_t[0]                                # (E, 4H)
    w_hh0_t = w_hh_t[0]                                # (H, 4H)
    w1_kstack = jnp.concatenate([w_ih_t[1], w_hh_t[1]], axis=0)   # (2H, 4H)
    bias0 = bias[0].reshape(1, 4 * H)
    bias1 = bias[1].reshape(1, 4 * H)
    # Only output column H-1 of the fc head survives out[:, -1]; slice it in glue.
    fc_row = fc_w[H - 1:H, :]                          # (1, H)
    fc_b_last = fc_b[H - 1:H].reshape(1, 1)            # (1, 1)

    vmem = lambda: pl.BlockSpec(memory_space=pltpu.MemorySpace.VMEM)

    out_last, packed_state = pl.pallas_call(
        sentiment_rnn_kernel,
        out_shape=(
            jax.ShapeDtypeStruct((B, 1), jnp.float32),
            jax.ShapeDtypeStruct((B, 2 * L * H), jnp.float32),
        ),
        in_specs=[vmem() for _ in range(11)],
        out_specs=(vmem(), vmem()),
    )(ids_tb, emb_table, w_ih0_t, w_hh0_t, w1_kstack, bias0, bias1, h0, c0,
      fc_row, fc_b_last)

    # Split the packed lane-dense state slab back into (L, B, H) h_n / c_n.
    h_n = jnp.stack([packed_state[:, 0:H], packed_state[:, H:2 * H]], axis=0)
    c_n = jnp.stack([packed_state[:, 2 * H:3 * H], packed_state[:, 3 * H:4 * H]], axis=0)
    out = out_last[:, 0]                               # (B,)
    return out, (h_n, c_n)


def reference_forward(x_tokens, hidden, emb_table, w_ih, w_hh, b_ih, b_hh, fc_w, fc_b):
    """Pure-JAX reference matching PyTorch LSTM semantics (for correctness check)."""
    h0, c0 = hidden
    B, T = x_tokens.shape
    L, _, H = h0.shape
    seq = jnp.take(emb_table, x_tokens.astype(jnp.int32), axis=0)   # (B, T, E)
    hs, cs = [], []
    for l in range(L):
        h, c = h0[l], c0[l]
        outs = []
        for t in range(T):
            gates = (seq[:, t] @ w_ih[l].T + (b_ih[l] + b_hh[l])[None, :]
                     + h @ w_hh[l].T)
            i_g = jax.nn.sigmoid(gates[:, 0 * H:1 * H])
            f_g = jax.nn.sigmoid(gates[:, 1 * H:2 * H])
            g_g = jnp.tanh(gates[:, 2 * H:3 * H])
            o_g = jax.nn.sigmoid(gates[:, 3 * H:4 * H])
            c = f_g * c + i_g * g_g
            h = o_g * jnp.tanh(c)
            outs.append(h)
        seq = jnp.stack(outs, axis=1)
        hs.append(h)
        cs.append(c)
    lstm_out = seq                                     # (B, T, H)
    out = jax.nn.sigmoid(lstm_out.reshape(-1, H) @ fc_w.T + fc_b[None, :])
    out = out.reshape(B, -1)[:, -1]
    return out, (jnp.stack(hs), jnp.stack(cs))


def init_params(key):
    """Deterministic synthetic parameters (shapes per the module's __init__)."""
    H, E, L, V = HIDDEN_DIM, EMBEDDING_DIM, N_LAYERS, VOCAB_SIZE
    stdv = 1.0 / np.sqrt(H)
    keys = jax.random.split(key, 2 + 4 * L + 2)
    emb_table = jax.random.normal(keys[0], (V, E), jnp.float32)
    w_ih, w_hh, b_ih, b_hh = [], [], [], []
    for l in range(L):
        in_dim = E if l == 0 else H
        k0, k1, k2, k3 = jax.random.split(keys[1 + l], 4)
        w_ih.append(jax.random.uniform(k0, (4 * H, in_dim), jnp.float32, -stdv, stdv))
        w_hh.append(jax.random.uniform(k1, (4 * H, H), jnp.float32, -stdv, stdv))
        b_ih.append(jax.random.uniform(k2, (4 * H,), jnp.float32, -stdv, stdv))
        b_hh.append(jax.random.uniform(k3, (4 * H,), jnp.float32, -stdv, stdv))
    # Module spec: self.fc = nn.Linear(hidden_dim, hidden_dim)  (output_size unused there).
    fc_w = jax.random.uniform(keys[-2], (H, H), jnp.float32, -stdv, stdv)
    fc_b = jax.random.uniform(keys[-1], (H,), jnp.float32, -stdv, stdv)
    return (emb_table, jnp.stack(w_ih), jnp.stack(w_hh),
            jnp.stack(b_ih), jnp.stack(b_hh), fc_w, fc_b)


if __name__ == "__main__":
    key = jax.random.PRNGKey(0)
    k_params, k_x = jax.random.split(key)
    emb_table, w_ih, w_hh, b_ih, b_hh, fc_w, fc_b = init_params(k_params)

    x = jax.random.randint(k_x, (BATCH, SEQ_LEN), 0, VOCAB_SIZE, dtype=jnp.int32)
    # init_hidden: zeros (n_layers, batch, hidden_dim)
    h0 = jnp.zeros((N_LAYERS, BATCH, HIDDEN_DIM), jnp.float32)
    c0 = jnp.zeros((N_LAYERS, BATCH, HIDDEN_DIM), jnp.float32)

    out, (h_n, c_n) = sentiment_rnn_forward(
        x, (h0, c0), emb_table, w_ih, w_hh, b_ih, b_hh, fc_w, fc_b)
    jax.block_until_ready((out, h_n, c_n))

    out_ref, (h_ref, c_ref) = reference_forward(
        x, (h0, c0), emb_table, w_ih, w_hh, b_ih, b_hh, fc_w, fc_b)
    np.testing.assert_allclose(np.asarray(out), np.asarray(out_ref), rtol=2e-5, atol=2e-5)
    np.testing.assert_allclose(np.asarray(h_n), np.asarray(h_ref), rtol=2e-5, atol=2e-5)
    np.testing.assert_allclose(np.asarray(c_n), np.asarray(c_ref), rtol=2e-5, atol=2e-5)

    print("KERNEL_OK")
</pallas_src>

<mosaic_0001>
module attributes {stable_mosaic.version = 11 : i64} {
  func.func @sentiment_rnn_kernel(%arg0: memref<16x1xi32, #tpu.memory_space<vmem>>, %arg1: memref<64x32xf32, #tpu.memory_space<vmem>>, %arg2: memref<32x128xf32, #tpu.memory_space<vmem>>, %arg3: memref<32x128xf32, #tpu.memory_space<vmem>>, %arg4: memref<64x128xf32, #tpu.memory_space<vmem>>, %arg5: memref<1x128xf32, #tpu.memory_space<vmem>>, %arg6: memref<1x128xf32, #tpu.memory_space<vmem>>, %arg7: memref<2x2x32xf32, #tpu.memory_space<vmem>>, %arg8: memref<2x2x32xf32, #tpu.memory_space<vmem>>, %arg9: memref<1x32xf32, #tpu.memory_space<vmem>>, %arg10: memref<1x1xf32, #tpu.memory_space<vmem>>, %arg11: memref<2x1xf32, #tpu.memory_space<vmem>>, %arg12: memref<2x128xf32, #tpu.memory_space<vmem>>) attributes {dimension_semantics = [], scalar_prefetch = 0 : i64, scratch_operands = 0 : i64, tpu.core_type = #tpu.core_type<tc>} {
    %c0 = arith.constant 0 : index
    %c0_0 = arith.constant 0 : index
    %0 = vector.load %arg0[%c0, %c0_0] : memref<16x1xi32, #tpu.memory_space<vmem>>, vector<16x1xi32>
    %1 = tpu.iota {dimensions = array<i32: 1>} : vector<16x64xi32>
    %2 = vector.broadcast %0 : vector<16x1xi32> to vector<16x64xi32>
    %3 = arith.cmpi eq, %2, %1 : vector<16x64xi32>
    %4 = arith.extui %3 : vector<16x64xi1> to vector<16x64xi32>
    %5 = arith.sitofp %4 : vector<16x64xi32> to vector<16x64xf32>
    %c0_1 = arith.constant 0 : index
    %c0_2 = arith.constant 0 : index
    %6 = vector.load %arg1[%c0_1, %c0_2] : memref<64x32xf32, #tpu.memory_space<vmem>>, vector<64x32xf32>
    %cst = arith.constant dense<0.000000e+00> : vector<16x32xf32>
    %7 = tpu.matmul %5, %6, %cst {dimension_numbers = #tpu.dot_dimension_numbers<[1], [0], [0], [1], [0, 0, 1, 1], [], []>} : vector<16x64xf32>, vector<64x32xf32>, vector<16x32xf32> -> vector<16x32xf32>
    %c0_3 = arith.constant 0 : index
    %c0_4 = arith.constant 0 : index
    %8 = vector.load %arg2[%c0_3, %c0_4] : memref<32x128xf32, #tpu.memory_space<vmem>>, vector<32x128xf32>
    %cst_5 = arith.constant dense<0.000000e+00> : vector<16x128xf32>
    %9 = tpu.matmul %7, %8, %cst_5 {dimension_numbers = #tpu.dot_dimension_numbers<[1], [0], [0], [1], [0, 0, 1, 1], [], []>} : vector<16x32xf32>, vector<32x128xf32>, vector<16x128xf32> -> vector<16x128xf32>
    %c0_6 = arith.constant 0 : index
    %c0_7 = arith.constant 0 : index
    %10 = vector.load %arg5[%c0_6, %c0_7] : memref<1x128xf32, #tpu.memory_space<vmem>>, vector<1x128xf32>
    %11 = vector.broadcast %10 : vector<1x128xf32> to vector<16x128xf32>
    %12 = arith.addf %9, %11 : vector<16x128xf32>
    %c0_8 = arith.constant 0 : index
    %c0_9 = arith.constant 0 : index
    %13 = vector.load %arg3[%c0_8, %c0_9] : memref<32x128xf32, #tpu.memory_space<vmem>>, vector<32x128xf32>
    %c0_10 = arith.constant 0 : index
    %c0_11 = arith.constant 0 : index
    %14 = vector.load %arg4[%c0_10, %c0_11] : memref<64x128xf32, #tpu.memory_space<vmem>>, vector<64x128xf32>
    %c0_12 = arith.constant 0 : index
    %c0_13 = arith.constant 0 : index
    %15 = vector.load %arg6[%c0_12, %c0_13] : memref<1x128xf32, #tpu.memory_space<vmem>>, vector<1x128xf32>
    %16 = vector.shape_cast %15 : vector<1x128xf32> to vector<1x128xf32>
    %17 = vector.broadcast %16 : vector<1x128xf32> to vector<2x128xf32>
    %c0_14 = arith.constant 0 : index
    %c0_15 = arith.constant 0 : index
    %c0_16 = arith.constant 0 : index
    %18 = vector.load %arg7[%c0_14, %c0_15, %c0_16] : memref<2x2x32xf32, #tpu.memory_space<vmem>>, vector<1x2x32xf32>
    %19 = vector.shape_cast %18 : vector<1x2x32xf32> to vector<2x32xf32>
    %c0_17 = arith.constant 0 : index
    %c0_18 = arith.constant 0 : index
    %c0_19 = arith.constant 0 : index
    %20 = vector.load %arg8[%c0_17, %c0_18, %c0_19] : memref<2x2x32xf32, #tpu.memory_space<vmem>>, vector<1x2x32xf32>
    %21 = vector.shape_cast %20 : vector<1x2x32xf32> to vector<2x32xf32>
    %c1 = arith.constant 1 : index
    %c0_20 = arith.constant 0 : index
    %c0_21 = arith.constant 0 : index
    %22 = vector.load %arg7[%c1, %c0_20, %c0_21] : memref<2x2x32xf32, #tpu.memory_space<vmem>>, vector<1x2x32xf32>
    %23 = vector.shape_cast %22 : vector<1x2x32xf32> to vector<2x32xf32>
    %c1_22 = arith.constant 1 : index
    %c0_23 = arith.constant 0 : index
    %c0_24 = arith.constant 0 : index
    %24 = vector.load %arg8[%c1_22, %c0_23, %c0_24] : memref<2x2x32xf32, #tpu.memory_space<vmem>>, vector<1x2x32xf32>
    %25 = vector.shape_cast %24 : vector<1x2x32xf32> to vector<2x32xf32>
    %26 = vector.extract_strided_slice %12 {offsets = [0, 0], sizes = [2, 128], strides = [1, 1]} : vector<16x128xf32> to vector<2x128xf32>
    %cst_25 = arith.constant dense<0.000000e+00> : vector<2x128xf32>
    %27 = tpu.matmul %19, %13, %cst_25 {dimension_numbers = #tpu.dot_dimension_numbers<[1], [0], [0], [1], [0, 0, 1, 1], [], []>} : vector<2x32xf32>, vector<32x128xf32>, vector<2x128xf32> -> vector<2x128xf32>
    %28 = arith.addf %26, %27 : vector<2x128xf32>
    %29 = arith.negf %28 : vector<2x128xf32>
    %30 = math.exp %29 : vector<2x128xf32>
    %cst_26 = arith.constant 1.000000e+00 : f32
    %31 = vector.broadcast %cst_26 : f32 to vector<2x128xf32>
    %32 = arith.addf %31, %30 : vector<2x128xf32>
    %33 = arith.divf %31, %32 : vector<2x128xf32>
    %34 = math.tanh %28 : vector<2x128xf32>
    %35 = vector.extract_strided_slice %33 {offsets = [0, 32], sizes = [2, 32], strides = [1, 1]} : vector<2x128xf32> to vector<2x32xf32>
    %36 = arith.mulf %35, %21 : vector<2x32xf32>
    %37 = vector.extract_strided_slice %33 {offsets = [0, 0], sizes = [2, 32], strides = [1, 1]} : vector<2x128xf32> to vector<2x32xf32>
    %38 = vector.extract_strided_slice %34 {offsets = [0, 64], sizes = [2, 32], strides = [1, 1]} : vector<2x128xf32> to vector<2x32xf32>
    %39 = arith.mulf %37, %38 : vector<2x32xf32>
    %40 = arith.addf %36, %39 : vector<2x32xf32>
    %41 = vector.extract_strided_slice %33 {offsets = [0, 96], sizes = [2, 32], strides = [1, 1]} : vector<2x128xf32> to vector<2x32xf32>
    %42 = math.tanh %40 : vector<2x32xf32>
    %43 = arith.mulf %41, %42 : vector<2x32xf32>
    %44 = vector.extract_strided_slice %12 {offsets = [2, 0], sizes = [2, 128], strides = [1, 1]} : vector<16x128xf32> to vector<2x128xf32>
    %cst_27 = arith.constant dense<0.000000e+00> : vector<2x128xf32>
    %45 = tpu.matmul %43, %13, %cst_27 {dimension_numbers = #tpu.dot_dimension_numbers<[1], [0], [0], [1], [0, 0, 1, 1], [], []>} : vector<2x32xf32>, vector<32x128xf32>, vector<2x128xf32> -> vector<2x128xf32>
    %46 = arith.addf %44, %45 : vector<2x128xf32>
    %47 = tpu.concatenate %43, %23 in 1 : vector<2x32xf32>, vector<2x32xf32> -> vector<2x64xf32>
    %cst_28 = arith.constant dense<0.000000e+00> : vector<2x128xf32>
    %48 = tpu.matmul %47, %14, %cst_28 {dimension_numbers = #tpu.dot_dimension_numbers<[1], [0], [0], [1], [0, 0, 1, 1], [], []>} : vector<2x64xf32>, vector<64x128xf32>, vector<2x128xf32> -> vector<2x128xf32>
    %49 = arith.addf %48, %17 : vector<2x128xf32>
    %50 = tpu.concatenate %46, %49 in 0 : vector<2x128xf32>, vector<2x128xf32> -> vector<4x128xf32>
    %51 = tpu.concatenate %40, %25 in 0 : vector<2x32xf32>, vector<2x32xf32> -> vector<4x32xf32>
    %52 = arith.negf %50 : vector<4x128xf32>
    %53 = math.exp %52 : vector<4x128xf32>
    %cst_29 = arith.constant 1.000000e+00 : f32
    %54 = vector.broadcast %cst_29 : f32 to vector<4x128xf32>
    %55 = arith.addf %54, %53 : vector<4x128xf32>
    %56 = arith.divf %54, %55 : vector<4x128xf32>
    %57 = math.tanh %50 : vector<4x128xf32>
    %58 = vector.extract_strided_slice %56 {offsets = [0, 32], sizes = [4, 32], strides = [1, 1]} : vector<4x128xf32> to vector<4x32xf32>
    %59 = arith.mulf %58, %51 : vector<4x32xf32>
    %60 = vector.extract_strided_slice %56 {offsets = [0, 0], sizes = [4, 32], strides = [1, 1]} : vector<4x128xf32> to vector<4x32xf32>
    %61 = vector.extract_strided_slice %57 {offsets = [0, 64], sizes = [4, 32], strides = [1, 1]} : vector<4x128xf32> to vector<4x32xf32>
    %62 = arith.mulf %60, %61 : vector<4x32xf32>
    %63 = arith.addf %59, %62 : vector<4x32xf32>
    %64 = vector.extract_strided_slice %56 {offsets = [0, 96], sizes = [4, 32], strides = [1, 1]} : vector<4x128xf32> to vector<4x32xf32>
    %65 = math.tanh %63 : vector<4x32xf32>
    %66 = arith.mulf %64, %65 : vector<4x32xf32>
    %67 = vector.extract_strided_slice %66 {offsets = [0, 0], sizes = [2, 32], strides = [1, 1]} : vector<4x32xf32> to vector<2x32xf32>
    %68 = vector.extract_strided_slice %66 {offsets = [2, 0], sizes = [2, 32], strides = [1, 1]} : vector<4x32xf32> to vector<2x32xf32>
    %69 = vector.extract_strided_slice %63 {offsets = [0, 0], sizes = [2, 32], strides = [1, 1]} : vector<4x32xf32> to vector<2x32xf32>
    %70 = vector.extract_strided_slice %63 {offsets = [2, 0], sizes = [2, 32], strides = [1, 1]} : vector<4x32xf32> to vector<2x32xf32>
    %71 = vector.extract_strided_slice %12 {offsets = [4, 0], sizes = [2, 128], strides = [1, 1]} : vector<16x128xf32> to vector<2x128xf32>
    %cst_30 = arith.constant dense<0.000000e+00> : vector<2x128xf32>
    %72 = tpu.matmul %67, %13, %cst_30 {dimension_numbers = #tpu.dot_dimension_numbers<[1], [0], [0], [1], [0, 0, 1, 1], [], []>} : vector<2x32xf32>, vector<32x128xf32>, vector<2x128xf32> -> vector<2x128xf32>
    %73 = arith.addf %71, %72 : vector<2x128xf32>
    %74 = tpu.concatenate %67, %68 in 1 : vector<2x32xf32>, vector<2x32xf32> -> vector<2x64xf32>
    %cst_31 = arith.constant dense<0.000000e+00> : vector<2x128xf32>
    %75 = tpu.matmul %74, %14, %cst_31 {dimension_numbers = #tpu.dot_dimension_numbers<[1], [0], [0], [1], [0, 0, 1, 1], [], []>} : vector<2x64xf32>, vector<64x128xf32>, vector<2x128xf32> -> vector<2x128xf32>
    %76 = arith.addf %75, %17 : vector<2x128xf32>
    %77 = tpu.concatenate %73, %76 in 0 : vector<2x128xf32>, vector<2x128xf32> -> vector<4x128xf32>
    %78 = tpu.concatenate %69, %70 in 0 : vector<2x32xf32>, vector<2x32xf32> -> vector<4x32xf32>
    %79 = arith.negf %77 : vector<4x128xf32>
    %80 = math.exp %79 : vector<4x128xf32>
    %cst_32 = arith.constant 1.000000e+00 : f32
    %81 = vector.broadcast %cst_32 : f32 to vector<4x128xf32>
    %82 = arith.addf %81, %80 : vector<4x128xf32>
    %83 = arith.divf %81, %82 : vector<4x128xf32>
    %84 = math.tanh %77 : vector<4x128xf32>
    %85 = vector.extract_strided_slice %83 {offsets = [0, 32], sizes = [4, 32], strides = [1, 1]} : vector<4x128xf32> to vector<4x32xf32>
    %86 = arith.mulf %85, %78 : vector<4x32xf32>
    %87 = vector.extract_strided_slice %83 {offsets = [0, 0], sizes = [4, 32], strides = [1, 1]} : vector<4x128xf32> to vector<4x32xf32>
    %88 = vector.extract_strided_slice %84 {offsets = [0, 64], sizes = [4, 32], strides = [1, 1]} : vector<4x128xf32> to vector<4x32xf32>
    %89 = arith.mulf %87, %88 : vector<4x32xf32>
    %90 = arith.addf %86, %89 : vector<4x32xf32>
    %91 = vector.extract_strided_slice %83 {offsets = [0, 96], sizes = [4, 32], strides = [1, 1]} : vector<4x128xf32> to vector<4x32xf32>
    %92 = math.tanh %90 : vector<4x32xf32>
    %93 = arith.mulf %91, %92 : vector<4x32xf32>
    %94 = vector.extract_strided_slice %93 {offsets = [0, 0], sizes = [2, 32], strides = [1, 1]} : vector<4x32xf32> to vector<2x32xf32>
    %95 = vector.extract_strided_slice %93 {offsets = [2, 0], sizes = [2, 32], strides = [1, 1]} : vector<4x32xf32> to vector<2x32xf32>
    %96 = vector.extract_strided_slice %90 {offsets = [0, 0], sizes = [2, 32], strides = [1, 1]} : vector<4x32xf32> to vector<2x32xf32>
    %97 = vector.extract_strided_slice %90 {offsets = [2, 0], sizes = [2, 32], strides = [1, 1]} : vector<4x32xf32> to vector<2x32xf32>
    %98 = vector.extract_strided_slice %12 {offsets = [6, 0], sizes = [2, 128], strides = [1, 1]} : vector<16x128xf32> to vector<2x128xf32>
    %cst_33 = arith.constant dense<0.000000e+00> : vector<2x128xf32>
    %99 = tpu.matmul %94, %13, %cst_33 {dimension_numbers = #tpu.dot_dimension_numbers<[1], [0], [0], [1], [0, 0, 1, 1], [], []>} : vector<2x32xf32>, vector<32x128xf32>, vector<2x128xf32> -> vector<2x128xf32>
    %100 = arith.addf %98, %99 : vector<2x128xf32>
    %101 = tpu.concatenate %94, %95 in 1 : vector<2x32xf32>, vector<2x32xf32> -> vector<2x64xf32>
    %cst_34 = arith.constant dense<0.000000e+00> : vector<2x128xf32>
    %102 = tpu.matmul %101, %14, %cst_34 {dimension_numbers = #tpu.dot_dimension_numbers<[1], [0], [0], [1], [0, 0, 1, 1], [], []>} : vector<2x64xf32>, vector<64x128xf32>, vector<2x128xf32> -> vector<2x128xf32>
    %103 = arith.addf %102, %17 : vector<2x128xf32>
    %104 = tpu.concatenate %100, %103 in 0 : vector<2x128xf32>, vector<2x128xf32> -> vector<4x128xf32>
    %105 = tpu.concatenate %96, %97 in 0 : vector<2x32xf32>, vector<2x32xf32> -> vector<4x32xf32>
    %106 = arith.negf %104 : vector<4x128xf32>
    %107 = math.exp %106 : vector<4x128xf32>
    %cst_35 = arith.constant 1.000000e+00 : f32
    %108 = vector.broadcast %cst_35 : f32 to vector<4x128xf32>
    %109 = arith.addf %108, %107 : vector<4x128xf32>
    %110 = arith.divf %108, %109 : vector<4x128xf32>
    %111 = math.tanh %104 : vector<4x128xf32>
    %112 = vector.extract_strided_slice %110 {offsets = [0, 32], sizes = [4, 32], strides = [1, 1]} : vector<4x128xf32> to vector<4x32xf32>
    %113 = arith.mulf %112, %105 : vector<4x32xf32>
    %114 = vector.extract_strided_slice %110 {offsets = [0, 0], sizes = [4, 32], strides = [1, 1]} : vector<4x128xf32> to vector<4x32xf32>
    %115 = vector.extract_strided_slice %111 {offsets = [0, 64], sizes = [4, 32], strides = [1, 1]} : vector<4x128xf32> to vector<4x32xf32>
    %116 = arith.mulf %114, %115 : vector<4x32xf32>
    %117 = arith.addf %113, %116 : vector<4x32xf32>
    %118 = vector.extract_strided_slice %110 {offsets = [0, 96], sizes = [4, 32], strides = [1, 1]} : vector<4x128xf32> to vector<4x32xf32>
    %119 = math.tanh %117 : vector<4x32xf32>
    %120 = arith.mulf %118, %119 : vector<4x32xf32>
    %121 = vector.extract_strided_slice %120 {offsets = [0, 0], sizes = [2, 32], strides = [1, 1]} : vector<4x32xf32> to vector<2x32xf32>
    %122 = vector.extract_strided_slice %120 {offsets = [2, 0], sizes = [2, 32], strides = [1, 1]} : vector<4x32xf32> to vector<2x32xf32>
    %123 = vector.extract_strided_slice %117 {offsets = [0, 0], sizes = [2, 32], strides = [1, 1]} : vector<4x32xf32> to vector<2x32xf32>
    %124 = vector.extract_strided_slice %117 {offsets = [2, 0], sizes = [2, 32], strides = [1, 1]} : vector<4x32xf32> to vector<2x32xf32>
    %125 = vector.extract_strided_slice %12 {offsets = [8, 0], sizes = [2, 128], strides = [1, 1]} : vector<16x128xf32> to vector<2x128xf32>
    %cst_36 = arith.constant dense<0.000000e+00> : vector<2x128xf32>
    %126 = tpu.matmul %121, %13, %cst_36 {dimension_numbers = #tpu.dot_dimension_numbers<[1], [0], [0], [1], [0, 0, 1, 1], [], []>} : vector<2x32xf32>, vector<32x128xf32>, vector<2x128xf32> -> vector<2x128xf32>
    %127 = arith.addf %125, %126 : vector<2x128xf32>
    %128 = tpu.concatenate %121, %122 in 1 : vector<2x32xf32>, vector<2x32xf32> -> vector<2x64xf32>
    %cst_37 = arith.constant dense<0.000000e+00> : vector<2x128xf32>
    %129 = tpu.matmul %128, %14, %cst_37 {dimension_numbers = #tpu.dot_dimension_numbers<[1], [0], [0], [1], [0, 0, 1, 1], [], []>} : vector<2x64xf32>, vector<64x128xf32>, vector<2x128xf32> -> vector<2x128xf32>
    %130 = arith.addf %129, %17 : vector<2x128xf32>
    %131 = tpu.concatenate %127, %130 in 0 : vector<2x128xf32>, vector<2x128xf32> -> vector<4x128xf32>
    %132 = tpu.concatenate %123, %124 in 0 : vector<2x32xf32>, vector<2x32xf32> -> vector<4x32xf32>
    %133 = arith.negf %131 : vector<4x128xf32>
    %134 = math.exp %133 : vector<4x128xf32>
    %cst_38 = arith.constant 1.000000e+00 : f32
    %135 = vector.broadcast %cst_38 : f32 to vector<4x128xf32>
    %136 = arith.addf %135, %134 : vector<4x128xf32>
    %137 = arith.divf %135, %136 : vector<4x128xf32>
    %138 = math.tanh %131 : vector<4x128xf32>
    %139 = vector.extract_strided_slice %137 {offsets = [0, 32], sizes = [4, 32], strides = [1, 1]} : vector<4x128xf32> to vector<4x32xf32>
    %140 = arith.mulf %139, %132 : vector<4x32xf32>
    %141 = vector.extract_strided_slice %137 {offsets = [0, 0], sizes = [4, 32], strides = [1, 1]} : vector<4x128xf32> to vector<4x32xf32>
    %142 = vector.extract_strided_slice %138 {offsets = [0, 64], sizes = [4, 32], strides = [1, 1]} : vector<4x128xf32> to vector<4x32xf32>
    %143 = arith.mulf %141, %142 : vector<4x32xf32>
    %144 = arith.addf %140, %143 : vector<4x32xf32>
    %145 = vector.extract_strided_slice %137 {offsets = [0, 96], sizes = [4, 32], strides = [1, 1]} : vector<4x128xf32> to vector<4x32xf32>
    %146 = math.tanh %144 : vector<4x32xf32>
    %147 = arith.mulf %145, %146 : vector<4x32xf32>
    %148 = vector.extract_strided_slice %147 {offsets = [0, 0], sizes = [2, 32], strides = [1, 1]} : vector<4x32xf32> to vector<2x32xf32>
    %149 = vector.extract_strided_slice %147 {offsets = [2, 0], sizes = [2, 32], strides = [1, 1]} : vector<4x32xf32> to vector<2x32xf32>
    %150 = vector.extract_strided_slice %144 {offsets = [0, 0], sizes = [2, 32], strides = [1, 1]} : vector<4x32xf32> to vector<2x32xf32>
    %151 = vector.extract_strided_slice %144 {offsets = [2, 0], sizes = [2, 32], strides = [1, 1]} : vector<4x32xf32> to vector<2x32xf32>
    %152 = vector.extract_strided_slice %12 {offsets = [10, 0], sizes = [2, 128], strides = [1, 1]} : vector<16x128xf32> to vector<2x128xf32>
    %cst_39 = arith.constant dense<0.000000e+00> : vector<2x128xf32>
    %153 = tpu.matmul %148, %13, %cst_39 {dimension_numbers = #tpu.dot_dimension_numbers<[1], [0], [0], [1], [0, 0, 1, 1], [], []>} : vector<2x32xf32>, vector<32x128xf32>, vector<2x128xf32> -> vector<2x128xf32>
    %154 = arith.addf %152, %153 : vector<2x128xf32>
    %155 = tpu.concatenate %148, %149 in 1 : vector<2x32xf32>, vector<2x32xf32> -> vector<2x64xf32>
    %cst_40 = arith.constant dense<0.000000e+00> : vector<2x128xf32>
    %156 = tpu.matmul %155, %14, %cst_40 {dimension_numbers = #tpu.dot_dimension_numbers<[1], [0], [0], [1], [0, 0, 1, 1], [], []>} : vector<2x64xf32>, vector<64x128xf32>, vector<2x128xf32> -> vector<2x128xf32>
    %157 = arith.addf %156, %17 : vector<2x128xf32>
    %158 = tpu.concatenate %154, %157 in 0 : vector<2x128xf32>, vector<2x128xf32> -> vector<4x128xf32>
    %159 = tpu.concatenate %150, %151 in 0 : vector<2x32xf32>, vector<2x32xf32> -> vector<4x32xf32>
    %160 = arith.negf %158 : vector<4x128xf32>
    %161 = math.exp %160 : vector<4x128xf32>
    %cst_41 = arith.constant 1.000000e+00 : f32
    %162 = vector.broadcast %cst_41 : f32 to vector<4x128xf32>
    %163 = arith.addf %162, %161 : vector<4x128xf32>
    %164 = arith.divf %162, %163 : vector<4x128xf32>
    %165 = math.tanh %158 : vector<4x128xf32>
    %166 = vector.extract_strided_slice %164 {offsets = [0, 32], sizes = [4, 32], strides = [1, 1]} : vector<4x128xf32> to vector<4x32xf32>
    %167 = arith.mulf %166, %159 : vector<4x32xf32>
    %168 = vector.extract_strided_slice %164 {offsets = [0, 0], sizes = [4, 32], strides = [1, 1]} : vector<4x128xf32> to vector<4x32xf32>
    %169 = vector.extract_strided_slice %165 {offsets = [0, 64], sizes = [4, 32], strides = [1, 1]} : vector<4x128xf32> to vector<4x32xf32>
    %170 = arith.mulf %168, %169 : vector<4x32xf32>
    %171 = arith.addf %167, %170 : vector<4x32xf32>
    %172 = vector.extract_strided_slice %164 {offsets = [0, 96], sizes = [4, 32], strides = [1, 1]} : vector<4x128xf32> to vector<4x32xf32>
    %173 = math.tanh %171 : vector<4x32xf32>
    %174 = arith.mulf %172, %173 : vector<4x32xf32>
    %175 = vector.extract_strided_slice %174 {offsets = [0, 0], sizes = [2, 32], strides = [1, 1]} : vector<4x32xf32> to vector<2x32xf32>
    %176 = vector.extract_strided_slice %174 {offsets = [2, 0], sizes = [2, 32], strides = [1, 1]} : vector<4x32xf32> to vector<2x32xf32>
    %177 = vector.extract_strided_slice %171 {offsets = [0, 0], sizes = [2, 32], strides = [1, 1]} : vector<4x32xf32> to vector<2x32xf32>
    %178 = vector.extract_strided_slice %171 {offsets = [2, 0], sizes = [2, 32], strides = [1, 1]} : vector<4x32xf32> to vector<2x32xf32>
    %179 = vector.extract_strided_slice %12 {offsets = [12, 0], sizes = [2, 128], strides = [1, 1]} : vector<16x128xf32> to vector<2x128xf32>
    %cst_42 = arith.constant dense<0.000000e+00> : vector<2x128xf32>
    %180 = tpu.matmul %175, %13, %cst_42 {dimension_numbers = #tpu.dot_dimension_numbers<[1], [0], [0], [1], [0, 0, 1, 1], [], []>} : vector<2x32xf32>, vector<32x128xf32>, vector<2x128xf32> -> vector<2x128xf32>
    %181 = arith.addf %179, %180 : vector<2x128xf32>
    %182 = tpu.concatenate %175, %176 in 1 : vector<2x32xf32>, vector<2x32xf32> -> vector<2x64xf32>
    %cst_43 = arith.constant dense<0.000000e+00> : vector<2x128xf32>
    %183 = tpu.matmul %182, %14, %cst_43 {dimension_numbers = #tpu.dot_dimension_numbers<[1], [0], [0], [1], [0, 0, 1, 1], [], []>} : vector<2x64xf32>, vector<64x128xf32>, vector<2x128xf32> -> vector<2x128xf32>
    %184 = arith.addf %183, %17 : vector<2x128xf32>
    %185 = tpu.concatenate %181, %184 in 0 : vector<2x128xf32>, vector<2x128xf32> -> vector<4x128xf32>
    %186 = tpu.concatenate %177, %178 in 0 : vector<2x32xf32>, vector<2x32xf32> -> vector<4x32xf32>
    %187 = arith.negf %185 : vector<4x128xf32>
    %188 = math.exp %187 : vector<4x128xf32>
    %cst_44 = arith.constant 1.000000e+00 : f32
    %189 = vector.broadcast %cst_44 : f32 to vector<4x128xf32>
    %190 = arith.addf %189, %188 : vector<4x128xf32>
    %191 = arith.divf %189, %190 : vector<4x128xf32>
    %192 = math.tanh %185 : vector<4x128xf32>
    %193 = vector.extract_strided_slice %191 {offsets = [0, 32], sizes = [4, 32], strides = [1, 1]} : vector<4x128xf32> to vector<4x32xf32>
    %194 = arith.mulf %193, %186 : vector<4x32xf32>
    %195 = vector.extract_strided_slice %191 {offsets = [0, 0], sizes = [4, 32], strides = [1, 1]} : vector<4x128xf32> to vector<4x32xf32>
    %196 = vector.extract_strided_slice %192 {offsets = [0, 64], sizes = [4, 32], strides = [1, 1]} : vector<4x128xf32> to vector<4x32xf32>
    %197 = arith.mulf %195, %196 : vector<4x32xf32>
    %198 = arith.addf %194, %197 : vector<4x32xf32>
    %199 = vector.extract_strided_slice %191 {offsets = [0, 96], sizes = [4, 32], strides = [1, 1]} : vector<4x128xf32> to vector<4x32xf32>
    %200 = math.tanh %198 : vector<4x32xf32>
    %201 = arith.mulf %199, %200 : vector<4x32xf32>
    %202 = vector.extract_strided_slice %201 {offsets = [0, 0], sizes = [2, 32], strides = [1, 1]} : vector<4x32xf32> to vector<2x32xf32>
    %203 = vector.extract_strided_slice %201 {offsets = [2, 0], sizes = [2, 32], strides = [1, 1]} : vector<4x32xf32> to vector<2x32xf32>
    %204 = vector.extract_strided_slice %198 {offsets = [0, 0], sizes = [2, 32], strides = [1, 1]} : vector<4x32xf32> to vector<2x32xf32>
    %205 = vector.extract_strided_slice %198 {offsets = [2, 0], sizes = [2, 32], strides = [1, 1]} : vector<4x32xf32> to vector<2x32xf32>
    %206 = vector.extract_strided_slice %12 {offsets = [14, 0], sizes = [2, 128], strides = [1, 1]} : vector<16x128xf32> to vector<2x128xf32>
    %cst_45 = arith.constant dense<0.000000e+00> : vector<2x128xf32>
    %207 = tpu.matmul %202, %13, %cst_45 {dimension_numbers = #tpu.dot_dimension_numbers<[1], [0], [0], [1], [0, 0, 1, 1], [], []>} : vector<2x32xf32>, vector<32x128xf32>, vector<2x128xf32> -> vector<2x128xf32>
    %208 = arith.addf %206, %207 : vector<2x128xf32>
    %209 = tpu.concatenate %202, %203 in 1 : vector<2x32xf32>, vector<2x32xf32> -> vector<2x64xf32>
    %cst_46 = arith.constant dense<0.000000e+00> : vector<2x128xf32>
    %210 = tpu.matmul %209, %14, %cst_46 {dimension_numbers = #tpu.dot_dimension_numbers<[1], [0], [0], [1], [0, 0, 1, 1], [], []>} : vector<2x64xf32>, vector<64x128xf32>, vector<2x128xf32> -> vector<2x128xf32>
    %211 = arith.addf %210, %17 : vector<2x128xf32>
    %212 = tpu.concatenate %208, %211 in 0 : vector<2x128xf32>, vector<2x128xf32> -> vector<4x128xf32>
    %213 = tpu.concatenate %204, %205 in 0 : vector<2x32xf32>, vector<2x32xf32> -> vector<4x32xf32>
    %214 = arith.negf %212 : vector<4x128xf32>
    %215 = math.exp %214 : vector<4x128xf32>
    %cst_47 = arith.constant 1.000000e+00 : f32
    %216 = vector.broadcast %cst_47 : f32 to vector<4x128xf32>
    %217 = arith.addf %216, %215 : vector<4x128xf32>
    %218 = arith.divf %216, %217 : vector<4x128xf32>
    %219 = math.tanh %212 : vector<4x128xf32>
    %220 = vector.extract_strided_slice %218 {offsets = [0, 32], sizes = [4, 32], strides = [1, 1]} : vector<4x128xf32> to vector<4x32xf32>
    %221 = arith.mulf %220, %213 : vector<4x32xf32>
    %222 = vector.extract_strided_slice %218 {offsets = [0, 0], sizes = [4, 32], strides = [1, 1]} : vector<4x128xf32> to vector<4x32xf32>
    %223 = vector.extract_strided_slice %219 {offsets = [0, 64], sizes = [4, 32], strides = [1, 1]} : vector<4x128xf32> to vector<4x32xf32>
    %224 = arith.mulf %222, %223 : vector<4x32xf32>
    %225 = arith.addf %221, %224 : vector<4x32xf32>
    %226 = vector.extract_strided_slice %218 {offsets = [0, 96], sizes = [4, 32], strides = [1, 1]} : vector<4x128xf32> to vector<4x32xf32>
    %227 = math.tanh %225 : vector<4x32xf32>
    %228 = arith.mulf %226, %227 : vector<4x32xf32>
    %229 = vector.extract_strided_slice %228 {offsets = [0, 0], sizes = [2, 32], strides = [1, 1]} : vector<4x32xf32> to vector<2x32xf32>
    %230 = vector.extract_strided_slice %228 {offsets = [2, 0], sizes = [2, 32], strides = [1, 1]} : vector<4x32xf32> to vector<2x32xf32>
    %231 = vector.extract_strided_slice %225 {offsets = [0, 0], sizes = [2, 32], strides = [1, 1]} : vector<4x32xf32> to vector<2x32xf32>
    %232 = vector.extract_strided_slice %225 {offsets = [2, 0], sizes = [2, 32], strides = [1, 1]} : vector<4x32xf32> to vector<2x32xf32>
    %233 = tpu.concatenate %229, %230 in 1 : vector<2x32xf32>, vector<2x32xf32> -> vector<2x64xf32>
    %cst_48 = arith.constant dense<0.000000e+00> : vector<2x128xf32>
    %234 = tpu.matmul %233, %14, %cst_48 {dimension_numbers = #tpu.dot_dimension_numbers<[1], [0], [0], [1], [0, 0, 1, 1], [], []>} : vector<2x64xf32>, vector<64x128xf32>, vector<2x128xf32> -> vector<2x128xf32>
    %235 = arith.addf %234, %17 : vector<2x128xf32>
    %236 = arith.negf %235 : vector<2x128xf32>
    %237 = math.exp %236 : vector<2x128xf32>
    %cst_49 = arith.constant 1.000000e+00 : f32
    %238 = vector.broadcast %cst_49 : f32 to vector<2x128xf32>
    %239 = arith.addf %238, %237 : vector<2x128xf32>
    %240 = arith.divf %238, %239 : vector<2x128xf32>
    %241 = math.tanh %235 : vector<2x128xf32>
    %242 = vector.extract_strided_slice %240 {offsets = [0, 32], sizes = [2, 32], strides = [1, 1]} : vector<2x128xf32> to vector<2x32xf32>
    %243 = arith.mulf %242, %232 : vector<2x32xf32>
    %244 = vector.extract_strided_slice %240 {offsets = [0, 0], sizes = [2, 32], strides = [1, 1]} : vector<2x128xf32> to vector<2x32xf32>
    %245 = vector.extract_strided_slice %241 {offsets = [0, 64], sizes = [2, 32], strides = [1, 1]} : vector<2x128xf32> to vector<2x32xf32>
    %246 = arith.mulf %244, %245 : vector<2x32xf32>
    %247 = arith.addf %243, %246 : vector<2x32xf32>
    %248 = vector.extract_strided_slice %240 {offsets = [0, 96], sizes = [2, 32], strides = [1, 1]} : vector<2x128xf32> to vector<2x32xf32>
    %249 = math.tanh %247 : vector<2x32xf32>
    %250 = arith.mulf %248, %249 : vector<2x32xf32>
    %251 = tpu.concatenate %229, %250, %231, %247 in 1 : vector<2x32xf32>, vector<2x32xf32>, vector<2x32xf32>, vector<2x32xf32> -> vector<2x128xf32>
    %c0_50 = arith.constant 0 : index
    %c0_51 = arith.constant 0 : index
    %252 = vector.load %arg12[%c0_50, %c0_51] : memref<2x128xf32, #tpu.memory_space<vmem>>, vector<2x128xf32>
    tpu.vector_store %arg12[%c0_50, %c0_51], %251 {strides = array<i32>} : memref<2x128xf32, #tpu.memory_space<vmem>>, vector<2x128xf32>,
    %c0_52 = arith.constant 0 : index
    %c0_53 = arith.constant 0 : index
    %253 = vector.load %arg9[%c0_52, %c0_53] : memref<1x32xf32, #tpu.memory_space<vmem>>, vector<1x32xf32>
    %254 = vector.broadcast %253 : vector<1x32xf32> to vector<2x32xf32>
    %255 = arith.mulf %250, %254 : vector<2x32xf32>
    %cst_54 = arith.constant dense<0.000000e+00> : vector<2xf32>
    %256 = vector.multi_reduction <add>, %255, %cst_54 [1] : vector<2x32xf32> to vector<2xf32>
    %257 = vector.shape_cast %256 : vector<2xf32> to vector<2x1xf32>
    %c0_55 = arith.constant 0 : index
    %c0_56 = arith.constant 0 : index
    %258 = vector.load %arg10[%c0_55, %c0_56] : memref<1x1xf32, #tpu.memory_space<vmem>>, vector<1x1xf32>
    %259 = vector.broadcast %258 : vector<1x1xf32> to vector<2x1xf32>
    %260 = arith.addf %257, %259 : vector<2x1xf32>
    %261 = arith.negf %260 : vector<2x1xf32>
    %262 = math.exp %261 : vector<2x1xf32>
    %cst_57 = arith.constant 1.000000e+00 : f32
    %263 = vector.broadcast %cst_57 : f32 to vector<2x1xf32>
    %264 = arith.addf %263, %262 : vector<2x1xf32>
    %265 = arith.divf %263, %264 : vector<2x1xf32>
    %c0_58 = arith.constant 0 : index
    %c0_59 = arith.constant 0 : index
    %266 = vector.load %arg11[%c0_58, %c0_59] : memref<2x1xf32, #tpu.memory_space<vmem>>, vector<2x1xf32>
    tpu.vector_store %arg11[%c0_58, %c0_59], %265 {strides = array<i32>} : memref<2x1xf32, #tpu.memory_space<vmem>>, vector<2x1xf32>,
    return
  }
}

</mosaic_0001>

<llo_original>
// kernel: sentiment_rnn_forward.1
$region0: #{sentiment_rnn_forward.1}
  #allocation0 [shape = 'u32[]', space=smem, size = 0x4, offset = 0x4, fixed_abs, tag = 'smem constant byte address 0x4 - core index']
  #allocation1 [shape = 'u32[144,128]{1,0:T(1,128)}', space=vmem, size = 0x12000, scoped, tag = 'internal scratch']
  #allocation2 [shape = 'f32[1,1]{1,0:T(1,128)S(1)}', space=vmem, size = 0x200, scoped, tag = 'scoped memory for sentiment_rnn_forward.1']
  %s0 = inlined_call_operand.vmem [shape: s32[16,1], index: 0, kind: input, shape index: {}]
  %s1 = inlined_call_operand.vmem [shape: f32[64,32], index: 1, kind: input, shape index: {}]
  %s2 = inlined_call_operand.vmem [shape: f32[32,128], index: 2, kind: input, shape index: {}]
  %s3 = inlined_call_operand.vmem [shape: f32[32,128], index: 3, kind: input, shape index: {}]
  %s4 = inlined_call_operand.vmem [shape: f32[64,128], index: 4, kind: input, shape index: {}]
  %s5 = inlined_call_operand.vmem [shape: f32[1,128], index: 5, kind: input, shape index: {}]
  %s6 = inlined_call_operand.vmem [shape: f32[1,128], index: 6, kind: input, shape index: {}]
  %s7 = inlined_call_operand.vmem [shape: f32[2,2,32], index: 7, kind: input, shape index: {}]
  %s8 = inlined_call_operand.vmem [shape: f32[2,2,32], index: 8, kind: input, shape index: {}]
  %s9 = inlined_call_operand.vmem [shape: f32[1,32], index: 9, kind: input, shape index: {}]
  %s10 = inlined_call_operand.<no memory space> [shape: f32[1,1], index: 10, kind: input, shape index: {}]
  %s11 = inlined_call_operand.vmem [shape: f32[2,1], index: 11, kind: output, shape index: {0}]
  %s12 = inlined_call_operand.vmem [shape: f32[2,128], index: 12, kind: output, shape index: {1}]
  %13 = xla_tuple %s11, %s12
  %s14 = sld [smem:[#allocation0]]
  $region62: #{sentiment_rnn_forward.1} parent=0
    _
  %s16 = ssub.s32 1, %s14
  %s17 = scalar_select 0, %s16, %s14
  %v18 = vstv %s10
  %19 = vst [vmem:[#allocation2] sm:$0x1] %v18
  // Predicated region
  $region2: #{sentiment_rnn_forward.1} parent=0 // pred_check
    _
  $region3: #{sentiment_rnn_forward.1} parent=0 // pred_check_branch
    %21 = sbr.rel (0) target = $region5
  $region4: #{sentiment_rnn_forward.1} parent=0 // pred_region
    _
  $region5: #{sentiment_rnn_forward.1} parent=0 // pred_fallthru
    _
  // Predicated region
  $region6: #{sentiment_rnn_forward.1} parent=0 // pred_check
    _
  $region7: #{sentiment_rnn_forward.1} parent=0 // pred_check_branch
    %23 = sbr.rel (0) target = $region9
  $region8: #{sentiment_rnn_forward.1} parent=0 // pred_region
    _
  $region9: #{sentiment_rnn_forward.1} parent=0 // pred_fallthru
    _
  // Predicated region
  $region10: #{sentiment_rnn_forward.1} parent=0 // pred_check
    _
  $region11: #{sentiment_rnn_forward.1} parent=0 // pred_check_branch
    %25 = sbr.rel (0) target = $region13
  $region12: #{sentiment_rnn_forward.1} parent=0 // pred_region
    _
  $region13: #{sentiment_rnn_forward.1} parent=0 // pred_fallthru
    _
  // Predicated region
  $region14: #{sentiment_rnn_forward.1} parent=0 // pred_check
    _
  $region15: #{sentiment_rnn_forward.1} parent=0 // pred_check_branch
    %27 = sbr.rel (0) target = $region17
  $region16: #{sentiment_rnn_forward.1} parent=0 // pred_region
    _
  $region17: #{sentiment_rnn_forward.1} parent=0 // pred_fallthru
    _
  // Predicated region
  $region18: #{sentiment_rnn_forward.1} parent=0 // pred_check
    _
  $region19: #{sentiment_rnn_forward.1} parent=0 // pred_check_branch
    %29 = sbr.rel (0) target = $region21
  $region20: #{sentiment_rnn_forward.1} parent=0 // pred_region
    _
  $region21: #{sentiment_rnn_forward.1} parent=0 // pred_fallthru
    _
  // Predicated region
  $region22: #{sentiment_rnn_forward.1} parent=0 // pred_check
    _
  $region23: #{sentiment_rnn_forward.1} parent=0 // pred_check_branch
    %31 = sbr.rel (0) target = $region25
  $region24: #{sentiment_rnn_forward.1} parent=0 // pred_region
    _
  $region25: #{sentiment_rnn_forward.1} parent=0 // pred_fallthru
    _
  // Predicated region
  $region26: #{sentiment_rnn_forward.1} parent=0 // pred_check
    _
  $region27: #{sentiment_rnn_forward.1} parent=0 // pred_check_branch
    %33 = sbr.rel (0) target = $region29
  $region28: #{sentiment_rnn_forward.1} parent=0 // pred_region
    _
  $region29: #{sentiment_rnn_forward.1} parent=0 // pred_fallthru
    _
  // Predicated region
  $region30: #{sentiment_rnn_forward.1} parent=0 // pred_check
    _
  $region31: #{sentiment_rnn_forward.1} parent=0 // pred_check_branch
    %35 = sbr.rel (0) target = $region33
  $region32: #{sentiment_rnn_forward.1} parent=0 // pred_region
    _
  $region33: #{sentiment_rnn_forward.1} parent=0 // pred_fallthru
    _
  // Predicated region
  $region34: #{sentiment_rnn_forward.1} parent=0 // pred_check
    _
  $region35: #{sentiment_rnn_forward.1} parent=0 // pred_check_branch
    %37 = sbr.rel (0) target = $region37
  $region36: #{sentiment_rnn_forward.1} parent=0 // pred_region
    _
  $region37: #{sentiment_rnn_forward.1} parent=0 // pred_fallthru
    _
  // Predicated region
  $region38: #{sentiment_rnn_forward.1} parent=0 // pred_check
    _
  $region39: #{sentiment_rnn_forward.1} parent=0 // pred_check_branch
    %39 = sbr.rel (0) target = $region41
  $region40: #{sentiment_rnn_forward.1} parent=0 // pred_region
    _
  $region41: #{sentiment_rnn_forward.1} parent=0 // pred_fallthru
    _
  // Predicated region
  $region42: #{sentiment_rnn_forward.1} parent=0 // pred_check
    _
  $region43: #{sentiment_rnn_forward.1} parent=0 // pred_check_branch
    %41 = sbr.rel (0) target = $region45
  $region44: #{sentiment_rnn_forward.1} parent=0 // pred_region
    _
  $region45: #{sentiment_rnn_forward.1} parent=0 // pred_fallthru
    _
  %v42 = vld [vmem:[%s0] sm:$0xff]
  %v43 = vld [vmem:[%s0 + $0x8] sm:$0xff]
  %v44 = vlaneseq
  %v45 = vand.u32 %v44, 127
  %46 = vset.pattern.permute.xlu0 0
  %47 = vperm.xlu0 %46, %v42
  %v48 = vpop.permute.xlu0 %47
  %49 = vset.pattern.permute.xlu0 0
  %50 = vperm.xlu0 %49, %v43
  %v51 = vpop.permute.xlu0 %50
  %vm52 = vcmp.eq.s32.totalorder %v48, %v45
  %vm53 = vcmp.eq.s32.totalorder %v51, %v45
  %v54 = vsel %vm52, 1, 0
  %v55 = vsel %vm53, 1, 0
  %v56 = vcvt.s32.f32 %v54
  %v57 = vcvt.s32.f32 %v55
  %v58 = vld [vmem:[%s1] sm:$0xff]
  %v59 = vld [vmem:[%s1 + $0x8] sm:$0xff]
  %v60 = vld [vmem:[%s1 + $0x10] sm:$0xff]
  %v61 = vld [vmem:[%s1 + $0x18] sm:$0xff]
  %v62 = vld [vmem:[%s1 + $0x20] sm:$0xff]
  %v63 = vld [vmem:[%s1 + $0x28] sm:$0xff]
  %v64 = vld [vmem:[%s1 + $0x30] sm:$0xff]
  %v65 = vld [vmem:[%s1 + $0x38] sm:$0xff]
  %vm66 = vcmask 523264
  %v68 = vsel %vm66, %v56, 0
  %v71 = vsel %vm66, %v57, 0
  %73 = vmatprep.subr.mxu0 0.0
  %74 = vmatpush1.msra.mxu0 0.0
  %75 = vmatprep.subr.mxu0 0.0
  %76 = vmatpush1.msra.mxu0 0.0
  %77 = vmatprep.subr.mxu0 0.0
  %78 = vmatpush1.msra.mxu0 0.0
  %79 = vmatprep.subr.mxu0 0.0
  %80 = vmatpush1.msra.mxu0 0.0
  %81 = vmatprep.subr.mxu0 0.0
  %82 = vmatpush1.msra.mxu0 0.0
  %83 = vmatprep.subr.mxu0 0.0
  %84 = vmatpush1.msra.mxu0 0.0
  %85 = vmatprep.subr.mxu0 0.0
  %86 = vmatpush1.msra.mxu0 0.0
  %87 = vmatprep.subr.mxu0 0.0
  %88 = vmatpush1.msra.mxu0 0.0
  %89 = vmatprep.subr.mxu0 0.0
  %90 = vmatpush1.msra.mxu0 %v65
  %91 = vmatprep.subr.mxu0 0.0
  %92 = vmatpush1.msra.mxu0 %v64
  %93 = vmatprep.subr.mxu0 0.0
  %94 = vmatpush1.msra.mxu0 %v63
  %95 = vmatprep.subr.mxu0 0.0
  %96 = vmatpush1.msra.mxu0 %v62
  %97 = vmatprep.subr.mxu0 0.0
  %98 = vmatpush1.msra.mxu0 %v61
  %99 = vmatprep.subr.mxu0 0.0
  %100 = vmatpush1.msra.mxu0 %v60
  %101 = vmatprep.subr.mxu0 0.0
  %102 = vmatpush1.msra.mxu0 %v59
  %103 = vmatprep.subr.mxu0 0.0
  %104 = vmatpush1.msra.mxu0 %v58
  %105 = vmatprep.subr.mxu0 0.0
  %106 = vmatpush2.msra.mxu0 0.0
  %107 = vmatprep.subr.mxu0 0.0
  %108 = vmatpush2.msra.mxu0 0.0
  %109 = vmatprep.subr.mxu0 0.0
  %110 = vmatpush2.msra.mxu0 0.0
  %111 = vmatprep.subr.mxu0 0.0
  %112 = vmatpush2.msra.mxu0 0.0
  %113 = vmatprep.subr.mxu0 0.0
  %114 = vmatpush2.msra.mxu0 0.0
  %115 = vmatprep.subr.mxu0 0.0
  %116 = vmatpush2.msra.mxu0 0.0
  %117 = vmatprep.subr.mxu0 0.0
  %118 = vmatpush2.msra.mxu0 0.0
  %119 = vmatprep.subr.mxu0 0.0
  %120 = vmatpush2.msra.mxu0 0.0
  %121 = vmatprep.subr.mxu0 0.0
  %122 = vmatpush2.msra.mxu0 0.0
  %123 = vmatprep.subr.mxu0 0.0
  %124 = vmatpush2.msra.mxu0 0.0
  %125 = vmatprep.subr.mxu0 0.0
  %126 = vmatpush2.msra.mxu0 0.0
  %127 = vmatprep.subr.mxu0 0.0
  %128 = vmatpush2.msra.mxu0 0.0
  %129 = vmatprep.subr.mxu0 0.0
  %130 = vmatpush2.msra.mxu0 0.0
  %131 = vmatprep.subr.mxu0 0.0
  %132 = vmatpush2.msra.mxu0 0.0
  %133 = vmatprep.subr.mxu0 0.0
  %134 = vmatpush2.msra.mxu0 0.0
  %135 = vmatprep.subr.mxu0 0.0
  %136 = vmatpush2.msra.mxu0 0.0
  %137 = vmatprep.mubr.f32.mxu0 0.0
  %138 = vmatmul.mubr.f32.gmra.mxu0 %v68
  %v139 = vpop.f32.mrf.mxu0
  %v140 = vadd.f32 0.0, %v139
  %v141 = vpop.f32.mrf.mxu0
  %142 = vmatprep.mubr.f32.mxu0 0.0
  %143 = vmatmul.mubr.f32.gmra.mxu0 %v71
  %v144 = vpop.f32.mrf.mxu0
  %v145 = vadd.f32 0.0, %v144
  %v146 = vpop.f32.mrf.mxu0
  %147 = vdwg.mxu0
  %v148 = vld [vmem:[%s2] sm:$0xff]
  %v149 = vld [vmem:[%s2 + $0x8] sm:$0xff]
  %v150 = vld [vmem:[%s2 + $0x10] sm:$0xff]
  %v151 = vld [vmem:[%s2 + $0x18] sm:$0xff]
  %v152 = vld [vmem:[%s5] sm:$0x1]
  %v154 = vlaneseq
  %v155 = vshrl.u32 %v154, 7
  %v156 = vsub.s32 0, %v155
  %v157 = vrot.slane %v152, %v156
  %vm159 = vcmask 261120
  %v161 = vsel %vm159, %v140, 0
  %v164 = vsel %vm159, %v145, 0
  %166 = vmatprep.subr.mxu0 0.0
  %167 = vmatpush1.msra.mxu0 0.0
  %168 = vmatprep.subr.mxu0 0.0
  %169 = vmatpush1.msra.mxu0 0.0
  %170 = vmatprep.subr.mxu0 0.0
  %171 = vmatpush1.msra.mxu0 0.0
  %172 = vmatprep.subr.mxu0 0.0
  %173 = vmatpush1.msra.mxu0 0.0
  %174 = vmatprep.subr.mxu0 0.0
  %175 = vmatpush1.msra.mxu0 0.0
  %176 = vmatprep.subr.mxu0 0.0
  %177 = vmatpush1.msra.mxu0 0.0
  %178 = vmatprep.subr.mxu0 0.0
  %179 = vmatpush1.msra.mxu0 0.0
  %180 = vmatprep.subr.mxu0 0.0
  %181 = vmatpush1.msra.mxu0 0.0
  %182 = vmatprep.subr.mxu0 0.0
  %183 = vmatpush1.msra.mxu0 0.0
  %184 = vmatprep.subr.mxu0 0.0
  %185 = vmatpush1.msra.mxu0 0.0
  %186 = vmatprep.subr.mxu0 0.0
  %187 = vmatpush1.msra.mxu0 0.0
  %188 = vmatprep.subr.mxu0 0.0
  %189 = vmatpush1.msra.mxu0 0.0
  %190 = vmatprep.subr.mxu0 0.0
  %191 = vmatpush1.msra.mxu0 %v151
  %192 = vmatprep.subr.mxu0 0.0
  %193 = vmatpush1.msra.mxu0 %v150
  %194 = vmatprep.subr.mxu0 0.0
  %195 = vmatpush1.msra.mxu0 %v149
  %196 = vmatprep.subr.mxu0 0.0
  %197 = vmatpush1.msra.mxu0 %v148
  %198 = vmatprep.subr.mxu0 0.0
  %199 = vmatpush2.msra.mxu0 0.0
  %200 = vmatprep.subr.mxu0 0.0
  %201 = vmatpush2.msra.mxu0 0.0
  %202 = vmatprep.subr.mxu0 0.0
  %203 = vmatpush2.msra.mxu0 0.0
  %204 = vmatprep.subr.mxu0 0.0
  %205 = vmatpush2.msra.mxu0 0.0
  %206 = vmatprep.subr.mxu0 0.0
  %207 = vmatpush2.msra.mxu0 0.0
  %208 = vmatprep.subr.mxu0 0.0
  %209 = vmatpush2.msra.mxu0 0.0
  %210 = vmatprep.subr.mxu0 0.0
  %211 = vmatpush2.msra.mxu0 0.0
  %212 = vmatprep.subr.mxu0 0.0
  %213 = vmatpush2.msra.mxu0 0.0
  %214 = vmatprep.subr.mxu0 0.0
  %215 = vmatpush2.msra.mxu0 0.0
  %216 = vmatprep.subr.mxu0 0.0
  %217 = vmatpush2.msra.mxu0 0.0
  %218 = vmatprep.subr.mxu0 0.0
  %219 = vmatpush2.msra.mxu0 0.0
  %220 = vmatprep.subr.mxu0 0.0
  %221 = vmatpush2.msra.mxu0 0.0
  %222 = vmatprep.subr.mxu0 0.0
  %223 = vmatpush2.msra.mxu0 0.0
  %224 = vmatprep.subr.mxu0 0.0
  %225 = vmatpush2.msra.mxu0 0.0
  %226 = vmatprep.subr.mxu0 0.0
  %227 = vmatpush2.msra.mxu0 0.0
  %228 = vmatprep.subr.mxu0 0.0
  %229 = vmatpush2.msra.mxu0 0.0
  %230 = vmatprep.mubr.f32.mxu0 0.0
  %231 = vmatmul.mubr.f32.gmra.mxu0 %v161
  %v232 = vpop.f32.mrf.mxu0
  %v233 = vadd.f32 %v157, %v232
  %v234 = vpop.f32.mrf.mxu0
  %235 = vmatprep.mubr.f32.mxu0 0.0
  %236 = vmatmul.mubr.f32.gmra.mxu0 %v164
  %v237 = vpop.f32.mrf.mxu0
  %v238 = vadd.f32 %v157, %v237
  %v239 = vpop.f32.mrf.mxu0
  %240 = vdwg.mxu0
  %v241 = vld [vmem:[%s3] sm:$0xff]
  %v242 = vld [vmem:[%s3 + $0x8] sm:$0xff]
  %v243 = vld [vmem:[%s3 + $0x10] sm:$0xff]
  %v244 = vld [vmem:[%s3 + $0x18] sm:$0xff]
  %v245 = vld [vmem:[%s4] sm:$0xff]
  %v246 = vld [vmem:[%s4 + $0x8] sm:$0xff]
  %v247 = vld [vmem:[%s4 + $0x10] sm:$0xff]
  %v248 = vld [vmem:[%s4 + $0x18] sm:$0xff]
  %v249 = vld [vmem:[%s4 + $0x20] sm:$0xff]
  %v250 = vld [vmem:[%s4 + $0x28] sm:$0xff]
  %v251 = vld [vmem:[%s4 + $0x30] sm:$0xff]
  %v252 = vld [vmem:[%s4 + $0x38] sm:$0xff]
  %v253 = vld [vmem:[%s6] sm:$0x1]
  %v255 = vlaneseq
  %v256 = vshrl.u32 %v255, 7
  %v257 = vsub.s32 0, %v256
  %v258 = vrot.slane %v253, %v257
  %v260 = vld [vmem:[%s7] sm:$0x3]
  %v261 = vld [vmem:[%s8] sm:$0x3]
  %s262 = scalar_lea.vmem %s7, 2
  %v263 = vld [vmem:[%s262] sm:$0x3]
  %s264 = scalar_lea.vmem %s8, 2
  %v265 = vld [vmem:[%s264] sm:$0x3]
  %v267 = vsel %vm159, %v260, 0
  %269 = vmatprep.subr.mxu0 0.0
  %270 = vmatpush1.msra.mxu0 0.0
  %271 = vmatprep.subr.mxu0 0.0
  %272 = vmatpush1.msra.mxu0 0.0
  %273 = vmatprep.subr.mxu0 0.0
  %274 = vmatpush1.msra.mxu0 0.0
  %275 = vmatprep.subr.mxu0 0.0
  %276 = vmatpush1.msra.mxu0 0.0
  %277 = vmatprep.subr.mxu0 0.0
  %278 = vmatpush1.msra.mxu0 0.0
  %279 = vmatprep.subr.mxu0 0.0
  %280 = vmatpush1.msra.mxu0 0.0
  %281 = vmatprep.subr.mxu0 0.0
  %282 = vmatpush1.msra.mxu0 0.0
  %283 = vmatprep.subr.mxu0 0.0
  %284 = vmatpush1.msra.mxu0 0.0
  %285 = vmatprep.subr.mxu0 0.0
  %286 = vmatpush1.msra.mxu0 0.0
  %287 = vmatprep.subr.mxu0 0.0
  %288 = vmatpush1.msra.mxu0 0.0
  %289 = vmatprep.subr.mxu0 0.0
  %290 = vmatpush1.msra.mxu0 0.0
  %291 = vmatprep.subr.mxu0 0.0
  %292 = vmatpush1.msra.mxu0 0.0
  %293 = vmatprep.subr.mxu0 0.0
  %294 = vmatpush1.msra.mxu0 %v244
  %295 = vmatprep.subr.mxu0 0.0
  %296 = vmatpush1.msra.mxu0 %v243
  %297 = vmatprep.subr.mxu0 0.0
  %298 = vmatpush1.msra.mxu0 %v242
  %299 = vmatprep.subr.mxu0 0.0
  %300 = vmatpush1.msra.mxu0 %v241
  %301 = vmatprep.subr.mxu0 0.0
  %302 = vmatpush2.msra.mxu0 0.0
  %303 = vmatprep.subr.mxu0 0.0
  %304 = vmatpush2.msra.mxu0 0.0
  %305 = vmatprep.subr.mxu0 0.0
  %306 = vmatpush2.msra.mxu0 0.0
  %307 = vmatprep.subr.mxu0 0.0
  %308 = vmatpush2.msra.mxu0 0.0
  %309 = vmatprep.subr.mxu0 0.0
  %310 = vmatpush2.msra.mxu0 0.0
  %311 = vmatprep.subr.mxu0 0.0
  %312 = vmatpush2.msra.mxu0 0.0
  %313 = vmatprep.subr.mxu0 0.0
  %314 = vmatpush2.msra.mxu0 0.0
  %315 = vmatprep.subr.mxu0 0.0
  %316 = vmatpush2.msra.mxu0 0.0
  %317 = vmatprep.subr.mxu0 0.0
  %318 = vmatpush2.msra.mxu0 0.0
  %319 = vmatprep.subr.mxu0 0.0
  %320 = vmatpush2.msra.mxu0 0.0
  %321 = vmatprep.subr.mxu0 0.0
  %322 = vmatpush2.msra.mxu0 0.0
  %323 = vmatprep.subr.mxu0 0.0
  %324 = vmatpush2.msra.mxu0 0.0
  %325 = vmatprep.subr.mxu0 0.0
  %326 = vmatpush2.msra.mxu0 0.0
  %327 = vmatprep.subr.mxu0 0.0
  %328 = vmatpush2.msra.mxu0 0.0
  %329 = vmatprep.subr.mxu0 0.0
  %330 = vmatpush2.msra.mxu0 0.0
  %331 = vmatprep.subr.mxu0 0.0
  %332 = vmatpush2.msra.mxu0 0.0
  %333 = vmatprep.mubr.f32.mxu0 0.0
  %334 = vmatmul.mubr.f32.gmra.mxu0 %v267
  %v335 = vpop.f32.mrf.mxu0
  %v336 = vadd.f32 0.0, %v335
  %v337 = vpop.f32.mrf.mxu0
  %338 = vdwg.mxu0
  %v339 = vadd.f32 %v233, %v336
  %v340 = vxor.u32 %v339, 2147483648
  %v341 = vmul.f32 %v340, 1.442695
  %v342 = vpow.pop %v341
  %v343 = vadd.f32 %v342, 1.0
  %v344 = vrcp.pop %v343
  %v345 = vmul.f32 1.0, %v344
  %v346 = vtanh.pop %v339
  %348 = vrot.lane.b32.xlu0 %v261, 32
  %v349 = vpop.permute.xlu0 %348
  %v351 = vmul.f32 %v345, %v349
  %353 = vrot.lane.b32.xlu0 %v346, 64
  %v354 = vpop.permute.xlu0 %353
  %v356 = vmul.f32 %v345, %v354
  %358 = vrot.lane.b32.xlu0 %v356, 32
  %v359 = vpop.permute.xlu0 %358
  %v361 = vadd.f32 %v351, %v359
  %v362 = vtanh.pop %v361
  %364 = vrot.lane.b32.xlu0 %v362, 64
  %v365 = vpop.permute.xlu0 %364
  %v367 = vmul.f32 %v345, %v365
  %369 = vrot.lane.b32.xlu0 %v367, 32
  %v370 = vpop.permute.xlu0 %369
  %v371 = vsel %vm159, %v370, 0
  %373 = vmatprep.subr.mxu0 0.0
  %374 = vmatpush1.msra.mxu0 0.0
  %375 = vmatprep.subr.mxu0 0.0
  %376 = vmatpush1.msra.mxu0 0.0
  %377 = vmatprep.subr.mxu0 0.0
  %378 = vmatpush1.msra.mxu0 0.0
  %379 = vmatprep.subr.mxu0 0.0
  %380 = vmatpush1.msra.mxu0 0.0
  %381 = vmatprep.subr.mxu0 0.0
  %382 = vmatpush1.msra.mxu0 0.0
  %383 = vmatprep.subr.mxu0 0.0
  %384 = vmatpush1.msra.mxu0 0.0
  %385 = vmatprep.subr.mxu0 0.0
  %386 = vmatpush1.msra.mxu0 0.0
  %387 = vmatprep.subr.mxu0 0.0
  %388 = vmatpush1.msra.mxu0 0.0
  %389 = vmatprep.subr.mxu0 0.0
  %390 = vmatpush1.msra.mxu0 0.0
  %391 = vmatprep.subr.mxu0 0.0
  %392 = vmatpush1.msra.mxu0 0.0
  %393 = vmatprep.subr.mxu0 0.0
  %394 = vmatpush1.msra.mxu0 0.0
  %395 = vmatprep.subr.mxu0 0.0
  %396 = vmatpush1.msra.mxu0 0.0
  %397 = vmatprep.subr.mxu0 0.0
  %398 = vmatpush1.msra.mxu0 %v244
  %399 = vmatprep.subr.mxu0 0.0
  %400 = vmatpush1.msra.mxu0 %v243
  %401 = vmatprep.subr.mxu0 0.0
  %402 = vmatpush1.msra.mxu0 %v242
  %403 = vmatprep.subr.mxu0 0.0
  %404 = vmatpush1.msra.mxu0 %v241
  %405 = vmatprep.subr.mxu0 0.0
  %406 = vmatpush2.msra.mxu0 0.0
  %407 = vmatprep.subr.mxu0 0.0
  %408 = vmatpush2.msra.mxu0 0.0
  %409 = vmatprep.subr.mxu0 0.0
  %410 = vmatpush2.msra.mxu0 0.0
  %411 = vmatprep.subr.mxu0 0.0
  %412 = vmatpush2.msra.mxu0 0.0
  %413 = vmatprep.subr.mxu0 0.0
  %414 = vmatpush2.msra.mxu0 0.0
  %415 = vmatprep.subr.mxu0 0.0
  %416 = vmatpush2.msra.mxu0 0.0
  %417 = vmatprep.subr.mxu0 0.0
  %418 = vmatpush2.msra.mxu0 0.0
  %419 = vmatprep.subr.mxu0 0.0
  %420 = vmatpush2.msra.mxu0 0.0
  %421 = vmatprep.subr.mxu0 0.0
  %422 = vmatpush2.msra.mxu0 0.0
  %423 = vmatprep.subr.mxu0 0.0
  %424 = vmatpush2.msra.mxu0 0.0
  %425 = vmatprep.subr.mxu0 0.0
  %426 = vmatpush2.msra.mxu0 0.0
  %427 = vmatprep.subr.mxu0 0.0
  %428 = vmatpush2.msra.mxu0 0.0
  %429 = vmatprep.subr.mxu0 0.0
  %430 = vmatpush2.msra.mxu0 0.0
  %431 = vmatprep.subr.mxu0 0.0
  %432 = vmatpush2.msra.mxu0 0.0
  %433 = vmatprep.subr.mxu0 0.0
  %434 = vmatpush2.msra.mxu0 0.0
  %435 = vmatprep.subr.mxu0 0.0
  %436 = vmatpush2.msra.mxu0 0.0
  %437 = vmatprep.mubr.f32.mxu0 0.0
  %438 = vmatmul.mubr.f32.gmra.mxu0 %v371
  %v439 = vpop.f32.mrf.mxu0
  %v440 = vadd.f32 0.0, %v439
  %v441 = vpop.f32.mrf.mxu0
  %442 = vdwg.mxu0
  %v444 = vrot.slane %v440, 6
  %v446 = vadd.f32 %v233, %v444
  %449 = vrot.lane.b32.xlu0 %v263, 32
  %v450 = vpop.permute.xlu0 %449
  %v452 = vsel %vm159, %v370, %v450
  %v454 = vsel %vm66, %v452, 0
  %456 = vmatprep.subr.mxu0 0.0
  %457 = vmatpush1.msra.mxu0 0.0
  %458 = vmatprep.subr.mxu0 0.0
  %459 = vmatpush1.msra.mxu0 0.0
  %460 = vmatprep.subr.mxu0 0.0
  %461 = vmatpush1.msra.mxu0 0.0
  %462 = vmatprep.subr.mxu0 0.0
  %463 = vmatpush1.msra.mxu0 0.0
  %464 = vmatprep.subr.mxu0 0.0
  %465 = vmatpush1.msra.mxu0 0.0
  %466 = vmatprep.subr.mxu0 0.0
  %467 = vmatpush1.msra.mxu0 0.0
  %468 = vmatprep.subr.mxu0 0.0
  %469 = vmatpush1.msra.mxu0 0.0
  %470 = vmatprep.subr.mxu0 0.0
  %471 = vmatpush1.msra.mxu0 0.0
  %472 = vmatprep.subr.mxu0 0.0
  %473 = vmatpush1.msra.mxu0 %v252
  %474 = vmatprep.subr.mxu0 0.0
  %475 = vmatpush1.msra.mxu0 %v251
  %476 = vmatprep.subr.mxu0 0.0
  %477 = vmatpush1.msra.mxu0 %v250
  %478 = vmatprep.subr.mxu0 0.0
  %479 = vmatpush1.msra.mxu0 %v249
  %480 = vmatprep.subr.mxu0 0.0
  %481 = vmatpush1.msra.mxu0 %v248
  %482 = vmatprep.subr.mxu0 0.0
  %483 = vmatpush1.msra.mxu0 %v247
  %484 = vmatprep.subr.mxu0 0.0
  %485 = vmatpush1.msra.mxu0 %v246
  %486 = vmatprep.subr.mxu0 0.0
  %487 = vmatpush1.msra.mxu0 %v245
  %488 = vmatprep.subr.mxu0 0.0
  %489 = vmatpush2.msra.mxu0 0.0
  %490 = vmatprep.subr.mxu0 0.0
  %491 = vmatpush2.msra.mxu0 0.0
  %492 = vmatprep.subr.mxu0 0.0
  %493 = vmatpush2.msra.mxu0 0.0
  %494 = vmatprep.subr.mxu0 0.0
  %495 = vmatpush2.msra.mxu0 0.0
  %496 = vmatprep.subr.mxu0 0.0
  %497 = vmatpush2.msra.mxu0 0.0
  %498 = vmatprep.subr.mxu0 0.0
  %499 = vmatpush2.msra.mxu0 0.0
  %500 = vmatprep.subr.mxu0 0.0
  %501 = vmatpush2.msra.mxu0 0.0
  %502 = vmatprep.subr.mxu0 0.0
  %503 = vmatpush2.msra.mxu0 0.0
  %504 = vmatprep.subr.mxu0 0.0
  %505 = vmatpush2.msra.mxu0 0.0
  %506 = vmatprep.subr.mxu0 0.0
  %507 = vmatpush2.msra.mxu0 0.0
  %508 = vmatprep.subr.mxu0 0.0
  %509 = vmatpush2.msra.mxu0 0.0
  %510 = vmatprep.subr.mxu0 0.0
  %511 = vmatpush2.msra.mxu0 0.0
  %512 = vmatprep.subr.mxu0 0.0
  %513 = vmatpush2.msra.mxu0 0.0
  %514 = vmatprep.subr.mxu0 0.0
  %515 = vmatpush2.msra.mxu0 0.0
  %516 = vmatprep.subr.mxu0 0.0
  %517 = vmatpush2.msra.mxu0 0.0
  %518 = vmatprep.subr.mxu0 0.0
  %519 = vmatpush2.msra.mxu0 0.0
  %520 = vmatprep.mubr.f32.mxu0 0.0
  %521 = vmatmul.mubr.f32.gmra.mxu0 %v454
  %v522 = vpop.f32.mrf.mxu0
  %v523 = vadd.f32 %v258, %v522
  %v524 = vpop.f32.mrf.mxu0
  %525 = vdwg.mxu0
  %v527 = vrot.slane %v446, 2
  %v530 = vrot.slane %v523, 6
  %vm532 = vcmask 1041408
  %v533 = vsel %vm532, %v527, %v530
  %v535 = vrot.slane %v265, 6
  %536 = vrot.lane.b32.xlu0 %v535, 32
  %v537 = vpop.permute.xlu0 %536
  %v539 = vsel %vm532, %v361, %v537
  %v540 = vxor.u32 %v533, 2147483648
  %v541 = vmul.f32 %v540, 1.442695
  %v542 = vpow.pop %v541
  %v543 = vadd.f32 %v542, 1.0
  %v544 = vrcp.pop %v543
  %v545 = vmul.f32 1.0, %v544
  %v546 = vtanh.pop %v533
  %v547 = vmul.f32 %v545, %v539
  %549 = vrot.lane.b32.xlu0 %v546, 64
  %v550 = vpop.permute.xlu0 %549
  %v552 = vmul.f32 %v545, %v550
  %554 = vrot.lane.b32.xlu0 %v552, 32
  %v555 = vpop.permute.xlu0 %554
  %v557 = vadd.f32 %v547, %v555
  %v558 = vtanh.pop %v557
  %560 = vrot.lane.b32.xlu0 %v558, 64
  %v561 = vpop.permute.xlu0 %560
  %v563 = vmul.f32 %v545, %v561
  %565 = vrot.lane.b32.xlu0 %v563, 32
  %v566 = vpop.permute.xlu0 %565
  %v567 = vsel %vm159, %v566, 0
  %569 = vmatprep.subr.mxu0 0.0
  %570 = vmatpush1.msra.mxu0 0.0
  %571 = vmatprep.subr.mxu0 0.0
  %572 = vmatpush1.msra.mxu0 0.0
  %573 = vmatprep.subr.mxu0 0.0
  %574 = vmatpush1.msra.mxu0 0.0
  %575 = vmatprep.subr.mxu0 0.0
  %576 = vmatpush1.msra.mxu0 0.0
  %577 = vmatprep.subr.mxu0 0.0
  %578 = vmatpush1.msra.mxu0 0.0
  %579 = vmatprep.subr.mxu0 0.0
  %580 = vmatpush1.msra.mxu0 0.0
  %581 = vmatprep.subr.mxu0 0.0
  %582 = vmatpush1.msra.mxu0 0.0
  %583 = vmatprep.subr.mxu0 0.0
  %584 = vmatpush1.msra.mxu0 0.0
  %585 = vmatprep.subr.mxu0 0.0
  %586 = vmatpush1.msra.mxu0 0.0
  %587 = vmatprep.subr.mxu0 0.0
  %588 = vmatpush1.msra.mxu0 0.0
  %589 = vmatprep.subr.mxu0 0.0
  %590 = vmatpush1.msra.mxu0 0.0
  %591 = vmatprep.subr.mxu0 0.0
  %592 = vmatpush1.msra.mxu0 0.0
  %593 = vmatprep.subr.mxu0 0.0
  %594 = vmatpush1.msra.mxu0 %v244
  %595 = vmatprep.subr.mxu0 0.0
  %596 = vmatpush1.msra.mxu0 %v243
  %597 = vmatprep.subr.mxu0 0.0
  %598 = vmatpush1.msra.mxu0 %v242
  %599 = vmatprep.subr.mxu0 0.0
  %600 = vmatpush1.msra.mxu0 %v241
  %601 = vmatprep.subr.mxu0 0.0
  %602 = vmatpush2.msra.mxu0 0.0
  %603 = vmatprep.subr.mxu0 0.0
  %604 = vmatpush2.msra.mxu0 0.0
  %605 = vmatprep.subr.mxu0 0.0
  %606 = vmatpush2.msra.mxu0 0.0
  %607 = vmatprep.subr.mxu0 0.0
  %608 = vmatpush2.msra.mxu0 0.0
  %609 = vmatprep.subr.mxu0 0.0
  %610 = vmatpush2.msra.mxu0 0.0
  %611 = vmatprep.subr.mxu0 0.0
  %612 = vmatpush2.msra.mxu0 0.0
  %613 = vmatprep.subr.mxu0 0.0
  %614 = vmatpush2.msra.mxu0 0.0
  %615 = vmatprep.subr.mxu0 0.0
  %616 = vmatpush2.msra.mxu0 0.0
  %617 = vmatprep.subr.mxu0 0.0
  %618 = vmatpush2.msra.mxu0 0.0
  %619 = vmatprep.subr.mxu0 0.0
  %620 = vmatpush2.msra.mxu0 0.0
  %621 = vmatprep.subr.mxu0 0.0
  %622 = vmatpush2.msra.mxu0 0.0
  %623 = vmatprep.subr.mxu0 0.0
  %624 = vmatpush2.msra.mxu0 0.0
  %625 = vmatprep.subr.mxu0 0.0
  %626 = vmatpush2.msra.mxu0 0.0
  %627 = vmatprep.subr.mxu0 0.0
  %628 = vmatpush2.msra.mxu0 0.0
  %629 = vmatprep.subr.mxu0 0.0
  %630 = vmatpush2.msra.mxu0 0.0
  %631 = vmatprep.subr.mxu0 0.0
  %632 = vmatpush2.msra.mxu0 0.0
  %633 = vmatprep.mubr.f32.mxu0 0.0
  %634 = vmatmul.mubr.f32.gmra.mxu0 %v567
  %v635 = vpop.f32.mrf.mxu0
  %v636 = vadd.f32 0.0, %v635
  %v637 = vpop.f32.mrf.mxu0
  %638 = vdwg.mxu0
  %v640 = vrot.slane %v636, 4
  %v642 = vadd.f32 %v233, %v640
  %v644 = vrot.slane %v563, 2
  %645 = vrot.lane.b32.xlu0 %v644, 64
  %v646 = vpop.permute.xlu0 %645
  %v648 = vsel %vm159, %v566, %v646
  %v650 = vsel %vm66, %v648, 0
  %652 = vmatprep.subr.mxu0 0.0
  %653 = vmatpush1.msra.mxu0 0.0
  %654 = vmatprep.subr.mxu0 0.0
  %655 = vmatpush1.msra.mxu0 0.0
  %656 = vmatprep.subr.mxu0 0.0
  %657 = vmatpush1.msra.mxu0 0.0
  %658 = vmatprep.subr.mxu0 0.0
  %659 = vmatpush1.msra.mxu0 0.0
  %660 = vmatprep.subr.mxu0 0.0
  %661 = vmatpush1.msra.mxu0 0.0
  %662 = vmatprep.subr.mxu0 0.0
  %663 = vmatpush1.msra.mxu0 0.0
  %664 = vmatprep.subr.mxu0 0.0
  %665 = vmatpush1.msra.mxu0 0.0
  %666 = vmatprep.subr.mxu0 0.0
  %667 = vmatpush1.msra.mxu0 0.0
  %668 = vmatprep.subr.mxu0 0.0
  %669 = vmatpush1.msra.mxu0 %v252
  %670 = vmatprep.subr.mxu0 0.0
  %671 = vmatpush1.msra.mxu0 %v251
  %672 = vmatprep.subr.mxu0 0.0
  %673 = vmatpush1.msra.mxu0 %v250
  %674 = vmatprep.subr.mxu0 0.0
  %675 = vmatpush1.msra.mxu0 %v249
  %676 = vmatprep.subr.mxu0 0.0
  %677 = vmatpush1.msra.mxu0 %v248
  %678 = vmatprep.subr.mxu0 0.0
  %679 = vmatpush1.msra.mxu0 %v247
  %680 = vmatprep.subr.mxu0 0.0
  %681 = vmatpush1.msra.mxu0 %v246
  %682 = vmatprep.subr.mxu0 0.0
  %683 = vmatpush1.msra.mxu0 %v245
  %684 = vmatprep.subr.mxu0 0.0
  %685 = vmatpush2.msra.mxu0 0.0
  %686 = vmatprep.subr.mxu0 0.0
  %687 = vmatpush2.msra.mxu0 0.0
  %688 = vmatprep.subr.mxu0 0.0
  %689 = vmatpush2.msra.mxu0 0.0
  %690 = vmatprep.subr.mxu0 0.0
  %691 = vmatpush2.msra.mxu0 0.0
  %692 = vmatprep.subr.mxu0 0.0
  %693 = vmatpush2.msra.mxu0 0.0
  %694 = vmatprep.subr.mxu0 0.0
  %695 = vmatpush2.msra.mxu0 0.0
  %696 = vmatprep.subr.mxu0 0.0
  %697 = vmatpush2.msra.mxu0 0.0
  %698 = vmatprep.subr.mxu0 0.0
  %699 = vmatpush2.msra.mxu0 0.0
  %700 = vmatprep.subr.mxu0 0.0
  %701 = vmatpush2.msra.mxu0 0.0
  %702 = vmatprep.subr.mxu0 0.0
  %703 = vmatpush2.msra.mxu0 0.0
  %704 = vmatprep.subr.mxu0 0.0
  %705 = vmatpush2.msra.mxu0 0.0
  %706 = vmatprep.subr.mxu0 0.0
  %707 = vmatpush2.msra.mxu0 0.0
  %708 = vmatprep.subr.mxu0 0.0
  %709 = vmatpush2.msra.mxu0 0.0
  %710 = vmatprep.subr.mxu0 0.0
  %711 = vmatpush2.msra.mxu0 0.0
  %712 = vmatprep.subr.mxu0 0.0
  %713 = vmatpush2.msra.mxu0 0.0
  %714 = vmatprep.subr.mxu0 0.0
  %715 = vmatpush2.msra.mxu0 0.0
  %716 = vmatprep.mubr.f32.mxu0 0.0
  %717 = vmatmul.mubr.f32.gmra.mxu0 %v650
  %v718 = vpop.f32.mrf.mxu0
  %v719 = vadd.f32 %v258, %v718
  %v720 = vpop.f32.mrf.mxu0
  %721 = vdwg.mxu0
  %v723 = vrot.slane %v642, 4
  %v726 = vrot.slane %v719, 6
  %v728 = vsel %vm532, %v723, %v726
  %v729 = vxor.u32 %v728, 2147483648
  %v730 = vmul.f32 %v729, 1.442695
  %v731 = vpow.pop %v730
  %v732 = vadd.f32 %v731, 1.0
  %v733 = vrcp.pop %v732
  %v734 = vmul.f32 1.0, %v733
  %v735 = vtanh.pop %v728
  %v736 = vmul.f32 %v734, %v557
  %738 = vrot.lane.b32.xlu0 %v735, 64
  %v739 = vpop.permute.xlu0 %738
  %v741 = vmul.f32 %v734, %v739
  %743 = vrot.lane.b32.xlu0 %v741, 32
  %v744 = vpop.permute.xlu0 %743
  %v746 = vadd.f32 %v736, %v744
  %v747 = vtanh.pop %v746
  %749 = vrot.lane.b32.xlu0 %v747, 64
  %v750 = vpop.permute.xlu0 %749
  %v752 = vmul.f32 %v734, %v750
  %754 = vrot.lane.b32.xlu0 %v752, 32
  %v755 = vpop.permute.xlu0 %754
  %v756 = vsel %vm159, %v755, 0
  %758 = vmatprep.subr.mxu0 0.0
  %759 = vmatpush1.msra.mxu0 0.0
  %760 = vmatprep.subr.mxu0 0.0
  %761 = vmatpush1.msra.mxu0 0.0
  %762 = vmatprep.subr.mxu0 0.0
  %763 = vmatpush1.msra.mxu0 0.0
  %764 = vmatprep.subr.mxu0 0.0
  %765 = vmatpush1.msra.mxu0 0.0
  %766 = vmatprep.subr.mxu0 0.0
  %767 = vmatpush1.msra.mxu0 0.0
  %768 = vmatprep.subr.mxu0 0.0
  %769 = vmatpush1.msra.mxu0 0.0
  %770 = vmatprep.subr.mxu0 0.0
  %771 = vmatpush1.msra.mxu0 0.0
  %772 = vmatprep.subr.mxu0 0.0
  %773 = vmatpush1.msra.mxu0 0.0
  %774 = vmatprep.subr.mxu0 0.0
  %775 = vmatpush1.msra.mxu0 0.0
  %776 = vmatprep.subr.mxu0 0.0
  %777 = vmatpush1.msra.mxu0 0.0
  %778 = vmatprep.subr.mxu0 0.0
  %779 = vmatpush1.msra.mxu0 0.0
  %780 = vmatprep.subr.mxu0 0.0
  %781 = vmatpush1.msra.mxu0 0.0
  %782 = vmatprep.subr.mxu0 0.0
  %783 = vmatpush1.msra.mxu0 %v244
  %784 = vmatprep.subr.mxu0 0.0
  %785 = vmatpush1.msra.mxu0 %v243
  %786 = vmatprep.subr.mxu0 0.0
  %787 = vmatpush1.msra.mxu0 %v242
  %788 = vmatprep.subr.mxu0 0.0
  %789 = vmatpush1.msra.mxu0 %v241
  %790 = vmatprep.subr.mxu0 0.0
  %791 = vmatpush2.msra.mxu0 0.0
  %792 = vmatprep.subr.mxu0 0.0
  %793 = vmatpush2.msra.mxu0 0.0
  %794 = vmatprep.subr.mxu0 0.0
  %795 = vmatpush2.msra.mxu0 0.0
  %796 = vmatprep.subr.mxu0 0.0
  %797 = vmatpush2.msra.mxu0 0.0
  %798 = vmatprep.subr.mxu0 0.0
  %799 = vmatpush2.msra.mxu0 0.0
  %800 = vmatprep.subr.mxu0 0.0
  %801 = vmatpush2.msra.mxu0 0.0
  %802 = vmatprep.subr.mxu0 0.0
  %803 = vmatpush2.msra.mxu0 0.0
  %804 = vmatprep.subr.mxu0 0.0
  %805 = vmatpush2.msra.mxu0 0.0
  %806 = vmatprep.subr.mxu0 0.0
  %807 = vmatpush2.msra.mxu0 0.0
  %808 = vmatprep.subr.mxu0 0.0
  %809 = vmatpush2.msra.mxu0 0.0
  %810 = vmatprep.subr.mxu0 0.0
  %811 = vmatpush2.msra.mxu0 0.0
  %812 = vmatprep.subr.mxu0 0.0
  %813 = vmatpush2.msra.mxu0 0.0
  %814 = vmatprep.subr.mxu0 0.0
  %815 = vmatpush2.msra.mxu0 0.0
  %816 = vmatprep.subr.mxu0 0.0
  %817 = vmatpush2.msra.mxu0 0.0
  %818 = vmatprep.subr.mxu0 0.0
  %819 = vmatpush2.msra.mxu0 0.0
  %820 = vmatprep.subr.mxu0 0.0
  %821 = vmatpush2.msra.mxu0 0.0
  %822 = vmatprep.mubr.f32.mxu0 0.0
  %823 = vmatmul.mubr.f32.gmra.mxu0 %v756
  %v824 = vpop.f32.mrf.mxu0
  %v825 = vadd.f32 0.0, %v824
  %v826 = vpop.f32.mrf.mxu0
  %827 = vdwg.mxu0
  %v829 = vrot.slane %v825, 2
  %v831 = vadd.f32 %v233, %v829
  %v833 = vrot.slane %v752, 2
  %834 = vrot.lane.b32.xlu0 %v833, 64
  %v835 = vpop.permute.xlu0 %834
  %v837 = vsel %vm159, %v755, %v835
  %v839 = vsel %vm66, %v837, 0
  %841 = vmatprep.subr.mxu0 0.0
  %842 = vmatpush1.msra.mxu0 0.0
  %843 = vmatprep.subr.mxu0 0.0
  %844 = vmatpush1.msra.mxu0 0.0
  %845 = vmatprep.subr.mxu0 0.0
  %846 = vmatpush1.msra.mxu0 0.0
  %847 = vmatprep.subr.mxu0 0.0
  %848 = vmatpush1.msra.mxu0 0.0
  %849 = vmatprep.subr.mxu0 0.0
  %850 = vmatpush1.msra.mxu0 0.0
  %851 = vmatprep.subr.mxu0 0.0
  %852 = vmatpush1.msra.mxu0 0.0
  %853 = vmatprep.subr.mxu0 0.0
  %854 = vmatpush1.msra.mxu0 0.0
  %855 = vmatprep.subr.mxu0 0.0
  %856 = vmatpush1.msra.mxu0 0.0
  %857 = vmatprep.subr.mxu0 0.0
  %858 = vmatpush1.msra.mxu0 %v252
  %859 = vmatprep.subr.mxu0 0.0
  %860 = vmatpush1.msra.mxu0 %v251
  %861 = vmatprep.subr.mxu0 0.0
  %862 = vmatpush1.msra.mxu0 %v250
  %863 = vmatprep.subr.mxu0 0.0
  %864 = vmatpush1.msra.mxu0 %v249
  %865 = vmatprep.subr.mxu0 0.0
  %866 = vmatpush1.msra.mxu0 %v248
  %867 = vmatprep.subr.mxu0 0.0
  %868 = vmatpush1.msra.mxu0 %v247
  %869 = vmatprep.subr.mxu0 0.0
  %870 = vmatpush1.msra.mxu0 %v246
  %871 = vmatprep.subr.mxu0 0.0
  %872 = vmatpush1.msra.mxu0 %v245
  %873 = vmatprep.subr.mxu0 0.0
  %874 = vmatpush2.msra.mxu0 0.0
  %875 = vmatprep.subr.mxu0 0.0
  %876 = vmatpush2.msra.mxu0 0.0
  %877 = vmatprep.subr.mxu0 0.0
  %878 = vmatpush2.msra.mxu0 0.0
  %879 = vmatprep.subr.mxu0 0.0
  %880 = vmatpush2.msra.mxu0 0.0
  %881 = vmatprep.subr.mxu0 0.0
  %882 = vmatpush2.msra.mxu0 0.0
  %883 = vmatprep.subr.mxu0 0.0
  %884 = vmatpush2.msra.mxu0 0.0
  %885 = vmatprep.subr.mxu0 0.0
  %886 = vmatpush2.msra.mxu0 0.0
  %887 = vmatprep.subr.mxu0 0.0
  %888 = vmatpush2.msra.mxu0 0.0
  %889 = vmatprep.subr.mxu0 0.0
  %890 = vmatpush2.msra.mxu0 0.0
  %891 = vmatprep.subr.mxu0 0.0
  %892 = vmatpush2.msra.mxu0 0.0
  %893 = vmatprep.subr.mxu0 0.0
  %894 = vmatpush2.msra.mxu0 0.0
  %895 = vmatprep.subr.mxu0 0.0
  %896 = vmatpush2.msra.mxu0 0.0
  %897 = vmatprep.subr.mxu0 0.0
  %898 = vmatpush2.msra.mxu0 0.0
  %899 = vmatprep.subr.mxu0 0.0
  %900 = vmatpush2.msra.mxu0 0.0
  %901 = vmatprep.subr.mxu0 0.0
  %902 = vmatpush2.msra.mxu0 0.0
  %903 = vmatprep.subr.mxu0 0.0
  %904 = vmatpush2.msra.mxu0 0.0
  %905 = vmatprep.mubr.f32.mxu0 0.0
  %906 = vmatmul.mubr.f32.gmra.mxu0 %v839
  %v907 = vpop.f32.mrf.mxu0
  %v908 = vadd.f32 %v258, %v907
  %v909 = vpop.f32.mrf.mxu0
  %910 = vdwg.mxu0
  %v912 = vrot.slane %v831, 6
  %v915 = vrot.slane %v908, 6
  %v917 = vsel %vm532, %v912, %v915
  %v918 = vxor.u32 %v917, 2147483648
  %v919 = vmul.f32 %v918, 1.442695
  %v920 = vpow.pop %v919
  %v921 = vadd.f32 %v920, 1.0
  %v922 = vrcp.pop %v921
  %v923 = vmul.f32 1.0, %v922
  %v924 = vtanh.pop %v917
  %v925 = vmul.f32 %v923, %v746
  %927 = vrot.lane.b32.xlu0 %v924, 64
  %v928 = vpop.permute.xlu0 %927
  %v930 = vmul.f32 %v923, %v928
  %932 = vrot.lane.b32.xlu0 %v930, 32
  %v933 = vpop.permute.xlu0 %932
  %v935 = vadd.f32 %v925, %v933
  %v936 = vtanh.pop %v935
  %938 = vrot.lane.b32.xlu0 %v936, 64
  %v939 = vpop.permute.xlu0 %938
  %v941 = vmul.f32 %v923, %v939
  %943 = vrot.lane.b32.xlu0 %v941, 32
  %v944 = vpop.permute.xlu0 %943
  %v945 = vsel %vm159, %v944, 0
  %947 = vmatprep.subr.mxu0 0.0
  %948 = vmatpush1.msra.mxu0 0.0
  %949 = vmatprep.subr.mxu0 0.0
  %950 = vmatpush1.msra.mxu0 0.0
  %951 = vmatprep.subr.mxu0 0.0
  %952 = vmatpush1.msra.mxu0 0.0
  %953 = vmatprep.subr.mxu0 0.0
  %954 = vmatpush1.msra.mxu0 0.0
  %955 = vmatprep.subr.mxu0 0.0
  %956 = vmatpush1.msra.mxu0 0.0
  %957 = vmatprep.subr.mxu0 0.0
  %958 = vmatpush1.msra.mxu0 0.0
  %959 = vmatprep.subr.mxu0 0.0
  %960 = vmatpush1.msra.mxu0 0.0
  %961 = vmatprep.subr.mxu0 0.0
  %962 = vmatpush1.msra.mxu0 0.0
  %963 = vmatprep.subr.mxu0 0.0
  %964 = vmatpush1.msra.mxu0 0.0
  %965 = vmatprep.subr.mxu0 0.0
  %966 = vmatpush1.msra.mxu0 0.0
  %967 = vmatprep.subr.mxu0 0.0
  %968 = vmatpush1.msra.mxu0 0.0
  %969 = vmatprep.subr.mxu0 0.0
  %970 = vmatpush1.msra.mxu0 0.0
  %971 = vmatprep.subr.mxu0 0.0
  %972 = vmatpush1.msra.mxu0 %v244
  %973 = vmatprep.subr.mxu0 0.0
  %974 = vmatpush1.msra.mxu0 %v243
  %975 = vmatprep.subr.mxu0 0.0
  %976 = vmatpush1.msra.mxu0 %v242
  %977 = vmatprep.subr.mxu0 0.0
  %978 = vmatpush1.msra.mxu0 %v241
  %979 = vmatprep.subr.mxu0 0.0
  %980 = vmatpush2.msra.mxu0 0.0
  %981 = vmatprep.subr.mxu0 0.0
  %982 = vmatpush2.msra.mxu0 0.0
  %983 = vmatprep.subr.mxu0 0.0
  %984 = vmatpush2.msra.mxu0 0.0
  %985 = vmatprep.subr.mxu0 0.0
  %986 = vmatpush2.msra.mxu0 0.0
  %987 = vmatprep.subr.mxu0 0.0
  %988 = vmatpush2.msra.mxu0 0.0
  %989 = vmatprep.subr.mxu0 0.0
  %990 = vmatpush2.msra.mxu0 0.0
  %991 = vmatprep.subr.mxu0 0.0
  %992 = vmatpush2.msra.mxu0 0.0
  %993 = vmatprep.subr.mxu0 0.0
  %994 = vmatpush2.msra.mxu0 0.0
  %995 = vmatprep.subr.mxu0 0.0
  %996 = vmatpush2.msra.mxu0 0.0
  %997 = vmatprep.subr.mxu0 0.0
  %998 = vmatpush2.msra.mxu0 0.0
  %999 = vmatprep.subr.mxu0 0.0
  %1000 = vmatpush2.msra.mxu0 0.0
  %1001 = vmatprep.subr.mxu0 0.0
  %1002 = vmatpush2.msra.mxu0 0.0
  %1003 = vmatprep.subr.mxu0 0.0
  %1004 = vmatpush2.msra.mxu0 0.0
  %1005 = vmatprep.subr.mxu0 0.0
  %1006 = vmatpush2.msra.mxu0 0.0
  %1007 = vmatprep.subr.mxu0 0.0
  %1008 = vmatpush2.msra.mxu0 0.0
  %1009 = vmatprep.subr.mxu0 0.0
  %1010 = vmatpush2.msra.mxu0 0.0
  %1011 = vmatprep.mubr.f32.mxu0 0.0
  %1012 = vmatmul.mubr.f32.gmra.mxu0 %v945
  %v1013 = vpop.f32.mrf.mxu0
  %v1014 = vadd.f32 0.0, %v1013
  %v1015 = vpop.f32.mrf.mxu0
  %1016 = vdwg.mxu0
  %v1017 = vadd.f32 %v238, %v1014
  %v1019 = vrot.slane %v941, 2
  %1020 = vrot.lane.b32.xlu0 %v1019, 64
  %v1021 = vpop.permute.xlu0 %1020
  %v1023 = vsel %vm159, %v944, %v1021
  %v1025 = vsel %vm66, %v1023, 0
  %1027 = vmatprep.subr.mxu0 0.0
  %1028 = vmatpush1.msra.mxu0 0.0
  %1029 = vmatprep.subr.mxu0 0.0
  %1030 = vmatpush1.msra.mxu0 0.0
  %1031 = vmatprep.subr.mxu0 0.0
  %1032 = vmatpush1.msra.mxu0 0.0
  %1033 = vmatprep.subr.mxu0 0.0
  %1034 = vmatpush1.msra.mxu0 0.0
  %1035 = vmatprep.subr.mxu0 0.0
  %1036 = vmatpush1.msra.mxu0 0.0
  %1037 = vmatprep.subr.mxu0 0.0
  %1038 = vmatpush1.msra.mxu0 0.0
  %1039 = vmatprep.subr.mxu0 0.0
  %1040 = vmatpush1.msra.mxu0 0.0
  %1041 = vmatprep.subr.mxu0 0.0
  %1042 = vmatpush1.msra.mxu0 0.0
  %1043 = vmatprep.subr.mxu0 0.0
  %1044 = vmatpush1.msra.mxu0 %v252
  %1045 = vmatprep.subr.mxu0 0.0
  %1046 = vmatpush1.msra.mxu0 %v251
  %1047 = vmatprep.subr.mxu0 0.0
  %1048 = vmatpush1.msra.mxu0 %v250
  %1049 = vmatprep.subr.mxu0 0.0
  %1050 = vmatpush1.msra.mxu0 %v249
  %1051 = vmatprep.subr.mxu0 0.0
  %1052 = vmatpush1.msra.mxu0 %v248
  %1053 = vmatprep.subr.mxu0 0.0
  %1054 = vmatpush1.msra.mxu0 %v247
  %1055 = vmatprep.subr.mxu0 0.0
  %1056 = vmatpush1.msra.mxu0 %v246
  %1057 = vmatprep.subr.mxu0 0.0
  %1058 = vmatpush1.msra.mxu0 %v245
  %1059 = vmatprep.subr.mxu0 0.0
  %1060 = vmatpush2.msra.mxu0 0.0
  %1061 = vmatprep.subr.mxu0 0.0
  %1062 = vmatpush2.msra.mxu0 0.0
  %1063 = vmatprep.subr.mxu0 0.0
  %1064 = vmatpush2.msra.mxu0 0.0
  %1065 = vmatprep.subr.mxu0 0.0
  %1066 = vmatpush2.msra.mxu0 0.0
  %1067 = vmatprep.subr.mxu0 0.0
  %1068 = vmatpush2.msra.mxu0 0.0
  %1069 = vmatprep.subr.mxu0 0.0
  %1070 = vmatpush2.msra.mxu0 0.0
  %1071 = vmatprep.subr.mxu0 0.0
  %1072 = vmatpush2.msra.mxu0 0.0
  %1073 = vmatprep.subr.mxu0 0.0
  %1074 = vmatpush2.msra.mxu0 0.0
  %1075 = vmatprep.subr.mxu0 0.0
  %1076 = vmatpush2.msra.mxu0 0.0
  %1077 = vmatprep.subr.mxu0 0.0
  %1078 = vmatpush2.msra.mxu0 0.0
  %1079 = vmatprep.subr.mxu0 0.0
  %1080 = vmatpush2.msra.mxu0 0.0
  %1081 = vmatprep.subr.mxu0 0.0
  %1082 = vmatpush2.msra.mxu0 0.0
  %1083 = vmatprep.subr.mxu0 0.0
  %1084 = vmatpush2.msra.mxu0 0.0
  %1085 = vmatprep.subr.mxu0 0.0
  %1086 = vmatpush2.msra.mxu0 0.0
  %1087 = vmatprep.subr.mxu0 0.0
  %1088 = vmatpush2.msra.mxu0 0.0
  %1089 = vmatprep.subr.mxu0 0.0
  %1090 = vmatpush2.msra.mxu0 0.0
  %1091 = vmatprep.mubr.f32.mxu0 0.0
  %1092 = vmatmul.mubr.f32.gmra.mxu0 %v1025
  %v1093 = vpop.f32.mrf.mxu0
  %v1094 = vadd.f32 %v258, %v1093
  %v1095 = vpop.f32.mrf.mxu0
  %1096 = vdwg.mxu0
  %v1098 = vrot.slane %v1094, 6
  %v1100 = vsel %vm532, %v1017, %v1098
  %v1101 = vxor.u32 %v1100, 2147483648
  %v1102 = vmul.f32 %v1101, 1.442695
  %v1103 = vpow.pop %v1102
  %v1104 = vadd.f32 %v1103, 1.0
  %v1105 = vrcp.pop %v1104
  %v1106 = vmul.f32 1.0, %v1105
  %v1107 = vtanh.pop %v1100
  %v1108 = vmul.f32 %v1106, %v935
  %1110 = vrot.lane.b32.xlu0 %v1107, 64
  %v1111 = vpop.permute.xlu0 %1110
  %v1113 = vmul.f32 %v1106, %v1111
  %1115 = vrot.lane.b32.xlu0 %v1113, 32
  %v1116 = vpop.permute.xlu0 %1115
  %v1118 = vadd.f32 %v1108, %v1116
  %v1119 = vtanh.pop %v1118
  %1121 = vrot.lane.b32.xlu0 %v1119, 64
  %v1122 = vpop.permute.xlu0 %1121
  %v1124 = vmul.f32 %v1106, %v1122
  %1126 = vrot.lane.b32.xlu0 %v1124, 32
  %v1127 = vpop.permute.xlu0 %1126
  %v1128 = vsel %vm159, %v1127, 0
  %1130 = vmatprep.subr.mxu0 0.0
  %1131 = vmatpush1.msra.mxu0 0.0
  %1132 = vmatprep.subr.mxu0 0.0
  %1133 = vmatpush1.msra.mxu0 0.0
  %1134 = vmatprep.subr.mxu0 0.0
  %1135 = vmatpush1.msra.mxu0 0.0
  %1136 = vmatprep.subr.mxu0 0.0
  %1137 = vmatpush1.msra.mxu0 0.0
  %1138 = vmatprep.subr.mxu0 0.0
  %1139 = vmatpush1.msra.mxu0 0.0
  %1140 = vmatprep.subr.mxu0 0.0
  %1141 = vmatpush1.msra.mxu0 0.0
  %1142 = vmatprep.subr.mxu0 0.0
  %1143 = vmatpush1.msra.mxu0 0.0
  %1144 = vmatprep.subr.mxu0 0.0
  %1145 = vmatpush1.msra.mxu0 0.0
  %1146 = vmatprep.subr.mxu0 0.0
  %1147 = vmatpush1.msra.mxu0 0.0
  %1148 = vmatprep.subr.mxu0 0.0
  %1149 = vmatpush1.msra.mxu0 0.0
  %1150 = vmatprep.subr.mxu0 0.0
  %1151 = vmatpush1.msra.mxu0 0.0
  %1152 = vmatprep.subr.mxu0 0.0
  %1153 = vmatpush1.msra.mxu0 0.0
  %1154 = vmatprep.subr.mxu0 0.0
  %1155 = vmatpush1.msra.mxu0 %v244
  %1156 = vmatprep.subr.mxu0 0.0
  %1157 = vmatpush1.msra.mxu0 %v243
  %1158 = vmatprep.subr.mxu0 0.0
  %1159 = vmatpush1.msra.mxu0 %v242
  %1160 = vmatprep.subr.mxu0 0.0
  %1161 = vmatpush1.msra.mxu0 %v241
  %1162 = vmatprep.subr.mxu0 0.0
  %1163 = vmatpush2.msra.mxu0 0.0
  %1164 = vmatprep.subr.mxu0 0.0
  %1165 = vmatpush2.msra.mxu0 0.0
  %1166 = vmatprep.subr.mxu0 0.0
  %1167 = vmatpush2.msra.mxu0 0.0
  %1168 = vmatprep.subr.mxu0 0.0
  %1169 = vmatpush2.msra.mxu0 0.0
  %1170 = vmatprep.subr.mxu0 0.0
  %1171 = vmatpush2.msra.mxu0 0.0
  %1172 = vmatprep.subr.mxu0 0.0
  %1173 = vmatpush2.msra.mxu0 0.0
  %1174 = vmatprep.subr.mxu0 0.0
  %1175 = vmatpush2.msra.mxu0 0.0
  %1176 = vmatprep.subr.mxu0 0.0
  %1177 = vmatpush2.msra.mxu0 0.0
  %1178 = vmatprep.subr.mxu0 0.0
  %1179 = vmatpush2.msra.mxu0 0.0
  %1180 = vmatprep.subr.mxu0 0.0
  %1181 = vmatpush2.msra.mxu0 0.0
  %1182 = vmatprep.subr.mxu0 0.0
  %1183 = vmatpush2.msra.mxu0 0.0
  %1184 = vmatprep.subr.mxu0 0.0
  %1185 = vmatpush2.msra.mxu0 0.0
  %1186 = vmatprep.subr.mxu0 0.0
  %1187 = vmatpush2.msra.mxu0 0.0
  %1188 = vmatprep.subr.mxu0 0.0
  %1189 = vmatpush2.msra.mxu0 0.0
  %1190 = vmatprep.subr.mxu0 0.0
  %1191 = vmatpush2.msra.mxu0 0.0
  %1192 = vmatprep.subr.mxu0 0.0
  %1193 = vmatpush2.msra.mxu0 0.0
  %1194 = vmatprep.mubr.f32.mxu0 0.0
  %1195 = vmatmul.mubr.f32.gmra.mxu0 %v1128
  %v1196 = vpop.f32.mrf.mxu0
  %v1197 = vadd.f32 0.0, %v1196
  %v1198 = vpop.f32.mrf.mxu0
  %1199 = vdwg.mxu0
  %v1201 = vrot.slane %v1197, 6
  %v1203 = vadd.f32 %v238, %v1201
  %v1205 = vrot.slane %v1124, 2
  %1206 = vrot.lane.b32.xlu0 %v1205, 64
  %v1207 = vpop.permute.xlu0 %1206
  %v1209 = vsel %vm159, %v1127, %v1207
  %v1211 = vsel %vm66, %v1209, 0
  %1213 = vmatprep.subr.mxu0 0.0
  %1214 = vmatpush1.msra.mxu0 0.0
  %1215 = vmatprep.subr.mxu0 0.0
  %1216 = vmatpush1.msra.mxu0 0.0
  %1217 = vmatprep.subr.mxu0 0.0
  %1218 = vmatpush1.msra.mxu0 0.0
  %1219 = vmatprep.subr.mxu0 0.0
  %1220 = vmatpush1.msra.mxu0 0.0
  %1221 = vmatprep.subr.mxu0 0.0
  %1222 = vmatpush1.msra.mxu0 0.0
  %1223 = vmatprep.subr.mxu0 0.0
  %1224 = vmatpush1.msra.mxu0 0.0
  %1225 = vmatprep.subr.mxu0 0.0
  %1226 = vmatpush1.msra.mxu0 0.0
  %1227 = vmatprep.subr.mxu0 0.0
  %1228 = vmatpush1.msra.mxu0 0.0
  %1229 = vmatprep.subr.mxu0 0.0
  %1230 = vmatpush1.msra.mxu0 %v252
  %1231 = vmatprep.subr.mxu0 0.0
  %1232 = vmatpush1.msra.mxu0 %v251
  %1233 = vmatprep.subr.mxu0 0.0
  %1234 = vmatpush1.msra.mxu0 %v250
  %1235 = vmatprep.subr.mxu0 0.0
  %1236 = vmatpush1.msra.mxu0 %v249
  %1237 = vmatprep.subr.mxu0 0.0
  %1238 = vmatpush1.msra.mxu0 %v248
  %1239 = vmatprep.subr.mxu0 0.0
  %1240 = vmatpush1.msra.mxu0 %v247
  %1241 = vmatprep.subr.mxu0 0.0
  %1242 = vmatpush1.msra.mxu0 %v246
  %1243 = vmatprep.subr.mxu0 0.0
  %1244 = vmatpush1.msra.mxu0 %v245
  %1245 = vmatprep.subr.mxu0 0.0
  %1246 = vmatpush2.msra.mxu0 0.0
  %1247 = vmatprep.subr.mxu0 0.0
  %1248 = vmatpush2.msra.mxu0 0.0
  %1249 = vmatprep.subr.mxu0 0.0
  %1250 = vmatpush2.msra.mxu0 0.0
  %1251 = vmatprep.subr.mxu0 0.0
  %1252 = vmatpush2.msra.mxu0 0.0
  %1253 = vmatprep.subr.mxu0 0.0
  %1254 = vmatpush2.msra.mxu0 0.0
  %1255 = vmatprep.subr.mxu0 0.0
  %1256 = vmatpush2.msra.mxu0 0.0
  %1257 = vmatprep.subr.mxu0 0.0
  %1258 = vmatpush2.msra.mxu0 0.0
  %1259 = vmatprep.subr.mxu0 0.0
  %1260 = vmatpush2.msra.mxu0 0.0
  %1261 = vmatprep.subr.mxu0 0.0
  %1262 = vmatpush2.msra.mxu0 0.0
  %1263 = vmatprep.subr.mxu0 0.0
  %1264 = vmatpush2.msra.mxu0 0.0
  %1265 = vmatprep.subr.mxu0 0.0
  %1266 = vmatpush2.msra.mxu0 0.0
  %1267 = vmatprep.subr.mxu0 0.0
  %1268 = vmatpush2.msra.mxu0 0.0
  %1269 = vmatprep.subr.mxu0 0.0
  %1270 = vmatpush2.msra.mxu0 0.0
  %1271 = vmatprep.subr.mxu0 0.0
  %1272 = vmatpush2.msra.mxu0 0.0
  %1273 = vmatprep.subr.mxu0 0.0
  %1274 = vmatpush2.msra.mxu0 0.0
  %1275 = vmatprep.subr.mxu0 0.0
  %1276 = vmatpush2.msra.mxu0 0.0
  %1277 = vmatprep.mubr.f32.mxu0 0.0
  %1278 = vmatmul.mubr.f32.gmra.mxu0 %v1211
  %v1279 = vpop.f32.mrf.mxu0
  %v1280 = vadd.f32 %v258, %v1279
  %v1281 = vpop.f32.mrf.mxu0
  %1282 = vdwg.mxu0
  %v1284 = vrot.slane %v1203, 2
  %v1287 = vrot.slane %v1280, 6
  %v1289 = vsel %vm532, %v1284, %v1287
  %v1290 = vxor.u32 %v1289, 2147483648
  %v1291 = vmul.f32 %v1290, 1.442695
  %v1292 = vpow.pop %v1291
  %v1293 = vadd.f32 %v1292, 1.0
  %v1294 = vrcp.pop %v1293
  %v1295 = vmul.f32 1.0, %v1294
  %v1296 = vtanh.pop %v1289
  %v1297 = vmul.f32 %v1295, %v1118
  %1299 = vrot.lane.b32.xlu0 %v1296, 64
  %v1300 = vpop.permute.xlu0 %1299
  %v1302 = vmul.f32 %v1295, %v1300
  %1304 = vrot.lane.b32.xlu0 %v1302, 32
  %v1305 = vpop.permute.xlu0 %1304
  %v1307 = vadd.f32 %v1297, %v1305
  %v1308 = vtanh.pop %v1307
  %1310 = vrot.lane.b32.xlu0 %v1308, 64
  %v1311 = vpop.permute.xlu0 %1310
  %v1313 = vmul.f32 %v1295, %v1311
  %1315 = vrot.lane.b32.xlu0 %v1313, 32
  %v1316 = vpop.permute.xlu0 %1315
  %v1317 = vsel %vm159, %v1316, 0
  %1319 = vmatprep.subr.mxu0 0.0
  %1320 = vmatpush1.msra.mxu0 0.0
  %1321 = vmatprep.subr.mxu0 0.0
  %1322 = vmatpush1.msra.mxu0 0.0
  %1323 = vmatprep.subr.mxu0 0.0
  %1324 = vmatpush1.msra.mxu0 0.0
  %1325 = vmatprep.subr.mxu0 0.0
  %1326 = vmatpush1.msra.mxu0 0.0
  %1327 = vmatprep.subr.mxu0 0.0
  %1328 = vmatpush1.msra.mxu0 0.0
  %1329 = vmatprep.subr.mxu0 0.0
  %1330 = vmatpush1.msra.mxu0 0.0
  %1331 = vmatprep.subr.mxu0 0.0
  %1332 = vmatpush1.msra.mxu0 0.0
  %1333 = vmatprep.subr.mxu0 0.0
  %1334 = vmatpush1.msra.mxu0 0.0
  %1335 = vmatprep.subr.mxu0 0.0
  %1336 = vmatpush1.msra.mxu0 0.0
  %1337 = vmatprep.subr.mxu0 0.0
  %1338 = vmatpush1.msra.mxu0 0.0
  %1339 = vmatprep.subr.mxu0 0.0
  %1340 = vmatpush1.msra.mxu0 0.0
  %1341 = vmatprep.subr.mxu0 0.0
  %1342 = vmatpush1.msra.mxu0 0.0
  %1343 = vmatprep.subr.mxu0 0.0
  %1344 = vmatpush1.msra.mxu0 %v244
  %1345 = vmatprep.subr.mxu0 0.0
  %1346 = vmatpush1.msra.mxu0 %v243
  %1347 = vmatprep.subr.mxu0 0.0
  %1348 = vmatpush1.msra.mxu0 %v242
  %1349 = vmatprep.subr.mxu0 0.0
  %1350 = vmatpush1.msra.mxu0 %v241
  %1351 = vmatprep.subr.mxu0 0.0
  %1352 = vmatpush2.msra.mxu0 0.0
  %1353 = vmatprep.subr.mxu0 0.0
  %1354 = vmatpush2.msra.mxu0 0.0
  %1355 = vmatprep.subr.mxu0 0.0
  %1356 = vmatpush2.msra.mxu0 0.0
  %1357 = vmatprep.subr.mxu0 0.0
  %1358 = vmatpush2.msra.mxu0 0.0
  %1359 = vmatprep.subr.mxu0 0.0
  %1360 = vmatpush2.msra.mxu0 0.0
  %1361 = vmatprep.subr.mxu0 0.0
  %1362 = vmatpush2.msra.mxu0 0.0
  %1363 = vmatprep.subr.mxu0 0.0
  %1364 = vmatpush2.msra.mxu0 0.0
  %1365 = vmatprep.subr.mxu0 0.0
  %1366 = vmatpush2.msra.mxu0 0.0
  %1367 = vmatprep.subr.mxu0 0.0
  %1368 = vmatpush2.msra.mxu0 0.0
  %1369 = vmatprep.subr.mxu0 0.0
  %1370 = vmatpush2.msra.mxu0 0.0
  %1371 = vmatprep.subr.mxu0 0.0
  %1372 = vmatpush2.msra.mxu0 0.0
  %1373 = vmatprep.subr.mxu0 0.0
  %1374 = vmatpush2.msra.mxu0 0.0
  %1375 = vmatprep.subr.mxu0 0.0
  %1376 = vmatpush2.msra.mxu0 0.0
  %1377 = vmatprep.subr.mxu0 0.0
  %1378 = vmatpush2.msra.mxu0 0.0
  %1379 = vmatprep.subr.mxu0 0.0
  %1380 = vmatpush2.msra.mxu0 0.0
  %1381 = vmatprep.subr.mxu0 0.0
  %1382 = vmatpush2.msra.mxu0 0.0
  %1383 = vmatprep.mubr.f32.mxu0 0.0
  %1384 = vmatmul.mubr.f32.gmra.mxu0 %v1317
  %v1385 = vpop.f32.mrf.mxu0
  %v1386 = vadd.f32 0.0, %v1385
  %v1387 = vpop.f32.mrf.mxu0
  %1388 = vdwg.mxu0
  %v1390 = vrot.slane %v1386, 4
  %v1392 = vadd.f32 %v238, %v1390
  %v1394 = vrot.slane %v1313, 2
  %1395 = vrot.lane.b32.xlu0 %v1394, 64
  %v1396 = vpop.permute.xlu0 %1395
  %v1398 = vsel %vm159, %v1316, %v1396
  %v1400 = vsel %vm66, %v1398, 0
  %1402 = vmatprep.subr.mxu0 0.0
  %1403 = vmatpush1.msra.mxu0 0.0
  %1404 = vmatprep.subr.mxu0 0.0
  %1405 = vmatpush1.msra.mxu0 0.0
  %1406 = vmatprep.subr.mxu0 0.0
  %1407 = vmatpush1.msra.mxu0 0.0
  %1408 = vmatprep.subr.mxu0 0.0
  %1409 = vmatpush1.msra.mxu0 0.0
  %1410 = vmatprep.subr.mxu0 0.0
  %1411 = vmatpush1.msra.mxu0 0.0
  %1412 = vmatprep.subr.mxu0 0.0
  %1413 = vmatpush1.msra.mxu0 0.0
  %1414 = vmatprep.subr.mxu0 0.0
  %1415 = vmatpush1.msra.mxu0 0.0
  %1416 = vmatprep.subr.mxu0 0.0
  %1417 = vmatpush1.msra.mxu0 0.0
  %1418 = vmatprep.subr.mxu0 0.0
  %1419 = vmatpush1.msra.mxu0 %v252
  %1420 = vmatprep.subr.mxu0 0.0
  %1421 = vmatpush1.msra.mxu0 %v251
  %1422 = vmatprep.subr.mxu0 0.0
  %1423 = vmatpush1.msra.mxu0 %v250
  %1424 = vmatprep.subr.mxu0 0.0
  %1425 = vmatpush1.msra.mxu0 %v249
  %1426 = vmatprep.subr.mxu0 0.0
  %1427 = vmatpush1.msra.mxu0 %v248
  %1428 = vmatprep.subr.mxu0 0.0
  %1429 = vmatpush1.msra.mxu0 %v247
  %1430 = vmatprep.subr.mxu0 0.0
  %1431 = vmatpush1.msra.mxu0 %v246
  %1432 = vmatprep.subr.mxu0 0.0
  %1433 = vmatpush1.msra.mxu0 %v245
  %1434 = vmatprep.subr.mxu0 0.0
  %1435 = vmatpush2.msra.mxu0 0.0
  %1436 = vmatprep.subr.mxu0 0.0
  %1437 = vmatpush2.msra.mxu0 0.0
  %1438 = vmatprep.subr.mxu0 0.0
  %1439 = vmatpush2.msra.mxu0 0.0
  %1440 = vmatprep.subr.mxu0 0.0
  %1441 = vmatpush2.msra.mxu0 0.0
  %1442 = vmatprep.subr.mxu0 0.0
  %1443 = vmatpush2.msra.mxu0 0.0
  %1444 = vmatprep.subr.mxu0 0.0
  %1445 = vmatpush2.msra.mxu0 0.0
  %1446 = vmatprep.subr.mxu0 0.0
  %1447 = vmatpush2.msra.mxu0 0.0
  %1448 = vmatprep.subr.mxu0 0.0
  %1449 = vmatpush2.msra.mxu0 0.0
  %1450 = vmatprep.subr.mxu0 0.0
  %1451 = vmatpush2.msra.mxu0 0.0
  %1452 = vmatprep.subr.mxu0 0.0
  %1453 = vmatpush2.msra.mxu0 0.0
  %1454 = vmatprep.subr.mxu0 0.0
  %1455 = vmatpush2.msra.mxu0 0.0
  %1456 = vmatprep.subr.mxu0 0.0
  %1457 = vmatpush2.msra.mxu0 0.0
  %1458 = vmatprep.subr.mxu0 0.0
  %1459 = vmatpush2.msra.mxu0 0.0
  %1460 = vmatprep.subr.mxu0 0.0
  %1461 = vmatpush2.msra.mxu0 0.0
  %1462 = vmatprep.subr.mxu0 0.0
  %1463 = vmatpush2.msra.mxu0 0.0
  %1464 = vmatprep.subr.mxu0 0.0
  %1465 = vmatpush2.msra.mxu0 0.0
  %1466 = vmatprep.mubr.f32.mxu0 0.0
  %1467 = vmatmul.mubr.f32.gmra.mxu0 %v1400
  %v1468 = vpop.f32.mrf.mxu0
  %v1469 = vadd.f32 %v258, %v1468
  %v1470 = vpop.f32.mrf.mxu0
  %1471 = vdwg.mxu0
  %v1473 = vrot.slane %v1392, 4
  %v1476 = vrot.slane %v1469, 6
  %v1478 = vsel %vm532, %v1473, %v1476
  %v1479 = vxor.u32 %v1478, 2147483648
  %v1480 = vmul.f32 %v1479, 1.442695
  %v1481 = vpow.pop %v1480
  %v1482 = vadd.f32 %v1481, 1.0
  %v1483 = vrcp.pop %v1482
  %v1484 = vmul.f32 1.0, %v1483
  %v1485 = vtanh.pop %v1478
  %v1486 = vmul.f32 %v1484, %v1307
  %1488 = vrot.lane.b32.xlu0 %v1485, 64
  %v1489 = vpop.permute.xlu0 %1488
  %v1491 = vmul.f32 %v1484, %v1489
  %1493 = vrot.lane.b32.xlu0 %v1491, 32
  %v1494 = vpop.permute.xlu0 %1493
  %v1496 = vadd.f32 %v1486, %v1494
  %v1497 = vtanh.pop %v1496
  %1499 = vrot.lane.b32.xlu0 %v1497, 64
  %v1500 = vpop.permute.xlu0 %1499
  %v1502 = vmul.f32 %v1484, %v1500
  %1504 = vrot.lane.b32.xlu0 %v1502, 32
  %v1505 = vpop.permute.xlu0 %1504
  %v1506 = vsel %vm159, %v1505, 0
  %1508 = vmatprep.subr.mxu0 0.0
  %1509 = vmatpush1.msra.mxu0 0.0
  %1510 = vmatprep.subr.mxu0 0.0
  %1511 = vmatpush1.msra.mxu0 0.0
  %1512 = vmatprep.subr.mxu0 0.0
  %1513 = vmatpush1.msra.mxu0 0.0
  %1514 = vmatprep.subr.mxu0 0.0
  %1515 = vmatpush1.msra.mxu0 0.0
  %1516 = vmatprep.subr.mxu0 0.0
  %1517 = vmatpush1.msra.mxu0 0.0
  %1518 = vmatprep.subr.mxu0 0.0
  %1519 = vmatpush1.msra.mxu0 0.0
  %1520 = vmatprep.subr.mxu0 0.0
  %1521 = vmatpush1.msra.mxu0 0.0
  %1522 = vmatprep.subr.mxu0 0.0
  %1523 = vmatpush1.msra.mxu0 0.0
  %1524 = vmatprep.subr.mxu0 0.0
  %1525 = vmatpush1.msra.mxu0 0.0
  %1526 = vmatprep.subr.mxu0 0.0
  %1527 = vmatpush1.msra.mxu0 0.0
  %1528 = vmatprep.subr.mxu0 0.0
  %1529 = vmatpush1.msra.mxu0 0.0
  %1530 = vmatprep.subr.mxu0 0.0
  %1531 = vmatpush1.msra.mxu0 0.0
  %1532 = vmatprep.subr.mxu0 0.0
  %1533 = vmatpush1.msra.mxu0 %v244
  %1534 = vmatprep.subr.mxu0 0.0
  %1535 = vmatpush1.msra.mxu0 %v243
  %1536 = vmatprep.subr.mxu0 0.0
  %1537 = vmatpush1.msra.mxu0 %v242
  %1538 = vmatprep.subr.mxu0 0.0
  %1539 = vmatpush1.msra.mxu0 %v241
  %1540 = vmatprep.subr.mxu0 0.0
  %1541 = vmatpush2.msra.mxu0 0.0
  %1542 = vmatprep.subr.mxu0 0.0
  %1543 = vmatpush2.msra.mxu0 0.0
  %1544 = vmatprep.subr.mxu0 0.0
  %1545 = vmatpush2.msra.mxu0 0.0
  %1546 = vmatprep.subr.mxu0 0.0
  %1547 = vmatpush2.msra.mxu0 0.0
  %1548 = vmatprep.subr.mxu0 0.0
  %1549 = vmatpush2.msra.mxu0 0.0
  %1550 = vmatprep.subr.mxu0 0.0
  %1551 = vmatpush2.msra.mxu0 0.0
  %1552 = vmatprep.subr.mxu0 0.0
  %1553 = vmatpush2.msra.mxu0 0.0
  %1554 = vmatprep.subr.mxu0 0.0
  %1555 = vmatpush2.msra.mxu0 0.0
  %1556 = vmatprep.subr.mxu0 0.0
  %1557 = vmatpush2.msra.mxu0 0.0
  %1558 = vmatprep.subr.mxu0 0.0
  %1559 = vmatpush2.msra.mxu0 0.0
  %1560 = vmatprep.subr.mxu0 0.0
  %1561 = vmatpush2.msra.mxu0 0.0
  %1562 = vmatprep.subr.mxu0 0.0
  %1563 = vmatpush2.msra.mxu0 0.0
  %1564 = vmatprep.subr.mxu0 0.0
  %1565 = vmatpush2.msra.mxu0 0.0
  %1566 = vmatprep.subr.mxu0 0.0
  %1567 = vmatpush2.msra.mxu0 0.0
  %1568 = vmatprep.subr.mxu0 0.0
  %1569 = vmatpush2.msra.mxu0 0.0
  %1570 = vmatprep.subr.mxu0 0.0
  %1571 = vmatpush2.msra.mxu0 0.0
  %1572 = vmatprep.mubr.f32.mxu0 0.0
  %1573 = vmatmul.mubr.f32.gmra.mxu0 %v1506
  %v1574 = vpop.f32.mrf.mxu0
  %v1575 = vadd.f32 0.0, %v1574
  %v1576 = vpop.f32.mrf.mxu0
  %1577 = vdwg.mxu0
  %v1579 = vrot.slane %v1575, 2
  %v1581 = vadd.f32 %v238, %v1579
  %v1583 = vrot.slane %v1502, 2
  %1584 = vrot.lane.b32.xlu0 %v1583, 64
  %v1585 = vpop.permute.xlu0 %1584
  %v1587 = vsel %vm159, %v1505, %v1585
  %v1589 = vsel %vm66, %v1587, 0
  %1591 = vmatprep.subr.mxu0 0.0
  %1592 = vmatpush1.msra.mxu0 0.0
  %1593 = vmatprep.subr.mxu0 0.0
  %1594 = vmatpush1.msra.mxu0 0.0
  %1595 = vmatprep.subr.mxu0 0.0
  %1596 = vmatpush1.msra.mxu0 0.0
  %1597 = vmatprep.subr.mxu0 0.0
  %1598 = vmatpush1.msra.mxu0 0.0
  %1599 = vmatprep.subr.mxu0 0.0
  %1600 = vmatpush1.msra.mxu0 0.0
  %1601 = vmatprep.subr.mxu0 0.0
  %1602 = vmatpush1.msra.mxu0 0.0
  %1603 = vmatprep.subr.mxu0 0.0
  %1604 = vmatpush1.msra.mxu0 0.0
  %1605 = vmatprep.subr.mxu0 0.0
  %1606 = vmatpush1.msra.mxu0 0.0
  %1607 = vmatprep.subr.mxu0 0.0
  %1608 = vmatpush1.msra.mxu0 %v252
  %1609 = vmatprep.subr.mxu0 0.0
  %1610 = vmatpush1.msra.mxu0 %v251
  %1611 = vmatprep.subr.mxu0 0.0
  %1612 = vmatpush1.msra.mxu0 %v250
  %1613 = vmatprep.subr.mxu0 0.0
  %1614 = vmatpush1.msra.mxu0 %v249
  %1615 = vmatprep.subr.mxu0 0.0
  %1616 = vmatpush1.msra.mxu0 %v248
  %1617 = vmatprep.subr.mxu0 0.0
  %1618 = vmatpush1.msra.mxu0 %v247
  %1619 = vmatprep.subr.mxu0 0.0
  %1620 = vmatpush1.msra.mxu0 %v246
  %1621 = vmatprep.subr.mxu0 0.0
  %1622 = vmatpush1.msra.mxu0 %v245
  %1623 = vmatprep.subr.mxu0 0.0
  %1624 = vmatpush2.msra.mxu0 0.0
  %1625 = vmatprep.subr.mxu0 0.0
  %1626 = vmatpush2.msra.mxu0 0.0
  %1627 = vmatprep.subr.mxu0 0.0
  %1628 = vmatpush2.msra.mxu0 0.0
  %1629 = vmatprep.subr.mxu0 0.0
  %1630 = vmatpush2.msra.mxu0 0.0
  %1631 = vmatprep.subr.mxu0 0.0
  %1632 = vmatpush2.msra.mxu0 0.0
  %1633 = vmatprep.subr.mxu0 0.0
  %1634 = vmatpush2.msra.mxu0 0.0
  %1635 = vmatprep.subr.mxu0 0.0
  %1636 = vmatpush2.msra.mxu0 0.0
  %1637 = vmatprep.subr.mxu0 0.0
  %1638 = vmatpush2.msra.mxu0 0.0
  %1639 = vmatprep.subr.mxu0 0.0
  %1640 = vmatpush2.msra.mxu0 0.0
  %1641 = vmatprep.subr.mxu0 0.0
  %1642 = vmatpush2.msra.mxu0 0.0
  %1643 = vmatprep.subr.mxu0 0.0
  %1644 = vmatpush2.msra.mxu0 0.0
  %1645 = vmatprep.subr.mxu0 0.0
  %1646 = vmatpush2.msra.mxu0 0.0
  %1647 = vmatprep.subr.mxu0 0.0
  %1648 = vmatpush2.msra.mxu0 0.0
  %1649 = vmatprep.subr.mxu0 0.0
  %1650 = vmatpush2.msra.mxu0 0.0
  %1651 = vmatprep.subr.mxu0 0.0
  %1652 = vmatpush2.msra.mxu0 0.0
  %1653 = vmatprep.subr.mxu0 0.0
  %1654 = vmatpush2.msra.mxu0 0.0
  %1655 = vmatprep.mubr.f32.mxu0 0.0
  %1656 = vmatmul.mubr.f32.gmra.mxu0 %v1589
  %v1657 = vpop.f32.mrf.mxu0
  %v1658 = vadd.f32 %v258, %v1657
  %v1659 = vpop.f32.mrf.mxu0
  %1660 = vdwg.mxu0
  %v1662 = vrot.slane %v1581, 6
  %v1665 = vrot.slane %v1658, 6
  %v1667 = vsel %vm532, %v1662, %v1665
  %v1668 = vxor.u32 %v1667, 2147483648
  %v1669 = vmul.f32 %v1668, 1.442695
  %v1670 = vpow.pop %v1669
  %v1671 = vadd.f32 %v1670, 1.0
  %v1672 = vrcp.pop %v1671
  %v1673 = vmul.f32 1.0, %v1672
  %v1674 = vtanh.pop %v1667
  %v1675 = vmul.f32 %v1673, %v1496
  %1677 = vrot.lane.b32.xlu0 %v1674, 64
  %v1678 = vpop.permute.xlu0 %1677
  %v1680 = vmul.f32 %v1673, %v1678
  %1682 = vrot.lane.b32.xlu0 %v1680, 32
  %v1683 = vpop.permute.xlu0 %1682
  %v1685 = vadd.f32 %v1675, %v1683
  %v1686 = vtanh.pop %v1685
  %1688 = vrot.lane.b32.xlu0 %v1686, 64
  %v1689 = vpop.permute.xlu0 %1688
  %v1691 = vmul.f32 %v1673, %v1689
  %1693 = vrot.lane.b32.xlu0 %v1691, 32
  %v1694 = vpop.permute.xlu0 %1693
  %v1696 = vrot.slane %v1691, 2
  %1697 = vrot.lane.b32.xlu0 %v1696, 64
  %v1698 = vpop.permute.xlu0 %1697
  %v1700 = vsel %vm159, %v1694, %v1698
  %v1702 = vsel %vm66, %v1700, 0
  %1704 = vmatprep.subr.mxu0 0.0
  %1705 = vmatpush1.msra.mxu0 0.0
  %1706 = vmatprep.subr.mxu0 0.0
  %1707 = vmatpush1.msra.mxu0 0.0
  %1708 = vmatprep.subr.mxu0 0.0
  %1709 = vmatpush1.msra.mxu0 0.0
  %1710 = vmatprep.subr.mxu0 0.0
  %1711 = vmatpush1.msra.mxu0 0.0
  %1712 = vmatprep.subr.mxu0 0.0
  %1713 = vmatpush1.msra.mxu0 0.0
  %1714 = vmatprep.subr.mxu0 0.0
  %1715 = vmatpush1.msra.mxu0 0.0
  %1716 = vmatprep.subr.mxu0 0.0
  %1717 = vmatpush1.msra.mxu0 0.0
  %1718 = vmatprep.subr.mxu0 0.0
  %1719 = vmatpush1.msra.mxu0 0.0
  %1720 = vmatprep.subr.mxu0 0.0
  %1721 = vmatpush1.msra.mxu0 %v252
  %1722 = vmatprep.subr.mxu0 0.0
  %1723 = vmatpush1.msra.mxu0 %v251
  %1724 = vmatprep.subr.mxu0 0.0
  %1725 = vmatpush1.msra.mxu0 %v250
  %1726 = vmatprep.subr.mxu0 0.0
  %1727 = vmatpush1.msra.mxu0 %v249
  %1728 = vmatprep.subr.mxu0 0.0
  %1729 = vmatpush1.msra.mxu0 %v248
  %1730 = vmatprep.subr.mxu0 0.0
  %1731 = vmatpush1.msra.mxu0 %v247
  %1732 = vmatprep.subr.mxu0 0.0
  %1733 = vmatpush1.msra.mxu0 %v246
  %1734 = vmatprep.subr.mxu0 0.0
  %1735 = vmatpush1.msra.mxu0 %v245
  %1736 = vmatprep.subr.mxu0 0.0
  %1737 = vmatpush2.msra.mxu0 0.0
  %1738 = vmatprep.subr.mxu0 0.0
  %1739 = vmatpush2.msra.mxu0 0.0
  %1740 = vmatprep.subr.mxu0 0.0
  %1741 = vmatpush2.msra.mxu0 0.0
  %1742 = vmatprep.subr.mxu0 0.0
  %1743 = vmatpush2.msra.mxu0 0.0
  %1744 = vmatprep.subr.mxu0 0.0
  %1745 = vmatpush2.msra.mxu0 0.0
  %1746 = vmatprep.subr.mxu0 0.0
  %1747 = vmatpush2.msra.mxu0 0.0
  %1748 = vmatprep.subr.mxu0 0.0
  %1749 = vmatpush2.msra.mxu0 0.0
  %1750 = vmatprep.subr.mxu0 0.0
  %1751 = vmatpush2.msra.mxu0 0.0
  %1752 = vmatprep.subr.mxu0 0.0
  %1753 = vmatpush2.msra.mxu0 0.0
  %1754 = vmatprep.subr.mxu0 0.0
  %1755 = vmatpush2.msra.mxu0 0.0
  %1756 = vmatprep.subr.mxu0 0.0
  %1757 = vmatpush2.msra.mxu0 0.0
  %1758 = vmatprep.subr.mxu0 0.0
  %1759 = vmatpush2.msra.mxu0 0.0
  %1760 = vmatprep.subr.mxu0 0.0
  %1761 = vmatpush2.msra.mxu0 0.0
  %1762 = vmatprep.subr.mxu0 0.0
  %1763 = vmatpush2.msra.mxu0 0.0
  %1764 = vmatprep.subr.mxu0 0.0
  %1765 = vmatpush2.msra.mxu0 0.0
  %1766 = vmatprep.subr.mxu0 0.0
  %1767 = vmatpush2.msra.mxu0 0.0
  %1768 = vmatprep.mubr.f32.mxu0 0.0
  %1769 = vmatmul.mubr.f32.gmra.mxu0 %v1702
  %v1770 = vpop.f32.mrf.mxu0
  %v1771 = vadd.f32 %v258, %v1770
  %v1772 = vpop.f32.mrf.mxu0
  %1773 = vdwg.mxu0
  %v1774 = vxor.u32 %v1771, 2147483648
  %v1775 = vmul.f32 %v1774, 1.442695
  %v1776 = vpow.pop %v1775
  %v1777 = vadd.f32 %v1776, 1.0
  %v1778 = vrcp.pop %v1777
  %v1779 = vmul.f32 1.0, %v1778
  %v1780 = vtanh.pop %v1771
  %v1782 = vrot.slane %v1685, 2
  %v1784 = vmul.f32 %v1779, %v1782
  %1786 = vrot.lane.b32.xlu0 %v1780, 64
  %v1787 = vpop.permute.xlu0 %1786
  %v1789 = vmul.f32 %v1779, %v1787
  %1791 = vrot.lane.b32.xlu0 %v1789, 32
  %v1792 = vpop.permute.xlu0 %1791
  %v1794 = vadd.f32 %v1784, %v1792
  %v1795 = vtanh.pop %v1794
  %1797 = vrot.lane.b32.xlu0 %v1795, 64
  %v1798 = vpop.permute.xlu0 %1797
  %v1800 = vmul.f32 %v1779, %v1798
  %1802 = vrot.lane.b32.xlu0 %v1800, 64
  %v1803 = vpop.permute.xlu0 %1802
  %1805 = vrot.lane.b32.xlu0 %v1685, 32
  %v1806 = vpop.permute.xlu0 %1805
  %1809 = vrot.lane.b32.xlu0 %v1794, 64
  %v1810 = vpop.permute.xlu0 %1809
  %v1812 = vsel %vm159, %v1694, %v1803
  %v1813 = vsel %vm66, %v1812, %v1806
  %vm1814 = vcmask 785408
  %v1815 = vsel %vm1814, %v1813, %v1810
  %1816 = vst [vmem:[%s12] sm:$0x3] %v1815
  %v1817 = vld [vmem:[%s9] sm:$0x1]
  %v1819 = vlaneseq
  %v1820 = vshrl.u32 %v1819, 7
  %v1821 = vsub.s32 0, %v1820
  %v1822 = vrot.slane %v1817, %v1821
  %1823 = vrot.lane.b32.xlu0 %v1822, 96
  %v1824 = vpop.permute.xlu0 %1823
  %v1826 = vmul.f32 %v1800, %v1824
  %1828 = vrot.lane.b32.xlu0 %v1826, 32
  %v1829 = vpop.permute.xlu0 %1828
  %vm1831 = vcmask 254976
  %v1832 = vsel %vm1831, %v1829, 0.0
  %1833 = vadd.xlane.f32.xlu0 %v1832
  %v1834 = vpop.xlane.xlu0 %1833
  %v1835 = vld [vmem:[#allocation2] sm:$0x1]
  %v1837 = vlaneseq
  %v1838 = vshrl.u32 %v1837, 7
  %v1839 = vsub.s32 0, %v1838
  %v1840 = vrot.slane %v1835, %v1839
  %v1842 = vadd.f32 %v1834, %v1840
  %v1843 = vxor.u32 %v1842, 2147483648
  %v1844 = vmul.f32 %v1843, 1.442695
  %v1845 = vpow.pop %v1844
  %v1846 = vadd.f32 %v1845, 1.0
  %v1847 = vrcp.pop %v1846
  %v1848 = vmul.f32 1.0, %v1847
  %vm1849 = vcmask 1024
  %1850 = vst.msk [vmem:[%s11] sm:$0x3] %vm1849, %v1848
  // Predicated region
  $region46: #{sentiment_rnn_forward.1} parent=0 // pred_check
    _
  $region47: #{sentiment_rnn_forward.1} parent=0 // pred_check_branch
    %1852 = sbr.rel (0) target = $region49
  $region48: #{sentiment_rnn_forward.1} parent=0 // pred_region
    _
  $region49: #{sentiment_rnn_forward.1} parent=0 // pred_fallthru
    _
  // Predicated region
  $region50: #{sentiment_rnn_forward.1} parent=0 // pred_check
    _
  $region51: #{sentiment_rnn_forward.1} parent=0 // pred_check_branch
    %1854 = sbr.rel (0) target = $region53
  $region52: #{sentiment_rnn_forward.1} parent=0 // pred_region
    _
  $region53: #{sentiment_rnn_forward.1} parent=0 // pred_fallthru
    _
  // Predicated region
  $region54: #{sentiment_rnn_forward.1} parent=0 // pred_check
    _
  $region55: #{sentiment_rnn_forward.1} parent=0 // pred_check_branch
    %1856 = sbr.rel (0) target = $region57
  $region56: #{sentiment_rnn_forward.1} parent=0 // pred_region
    _
  $region57: #{sentiment_rnn_forward.1} parent=0 // pred_fallthru
    _
  // Predicated region
  $region58: #{sentiment_rnn_forward.1} parent=0 // pred_check
    _
  $region59: #{sentiment_rnn_forward.1} parent=0 // pred_check_branch
    %1858 = sbr.rel (0) target = $region61
  $region60: #{sentiment_rnn_forward.1} parent=0 // pred_region
    _
  $region61: #{sentiment_rnn_forward.1} parent=0 // pred_fallthru
    _

</llo_original>
